<compile_context>
chip_gen: v6e
topology: v6e:2x2x1
jax: 0.10.0
libtpu: 0.0.40
codegen_flags: <defaults>
</compile_context>

<pallas_src>
import functools

import jax
import jax.numpy as jnp
from jax.experimental import pallas as pl
from jax.experimental.pallas import tpu as pltpu


def _round_up(x, m):
    return ((x + m - 1) // m) * m


def nfm_kernel(cont_ref, emb_ref, w_cont_ref, w_emb_ref, b_lin_ref,
               w1_ref, b1_ref, w2_ref, b2_ref, out_ref):
    # cont_ref: (TB, n_cont)   emb_ref: (F, TB, E)
    cont = cont_ref[...]
    F = emb_ref.shape[0]
    w_emb = w_emb_ref[...]                                   # (F, E)

    # ---- wide / linear head, continuous part: N=1 -> VPU mul + lane reduce
    lin = jnp.sum(cont * w_cont_ref[...], axis=-1, keepdims=True)     # (TB, 1)

    # ---- per-field unrolled accumulation (pure VPU adds on the leading axis)
    e0 = emb_ref[0]                                          # (TB, E)
    s = e0                                                   # sum_f v_f
    sq = e0 * e0                                             # sum_f v_f^2
    wsum = e0 * w_emb[0:1, :]                                # weighted emb for wide head
    for f in range(1, F):                                    # F is static (=3)
        e_f = emb_ref[f]
        s = s + e_f
        sq = sq + e_f * e_f
        wsum = wsum + e_f * w_emb[f:f + 1, :]

    # wide head embedding term: single lane reduce instead of a K=F*E, N=1 MXU dot
    lin = lin + jnp.sum(wsum, axis=-1, keepdims=True) + b_lin_ref[...]

    # ---- Bi-Interaction pooling: 0.5 * ((sum_f v_f)^2 - sum_f v_f^2)
    bi = 0.5 * (s * s - sq)                                  # (TB, E)

    # ---- deep MLP (eval mode: dropouts disabled)
    # TODO(synk): MLP class not shown in the reference; assumed Linear->ReLU per
    # layer (including the final 1-wide layer), matching the original port.
    h = jnp.maximum(
        jnp.dot(bi, w1_ref[...], preferred_element_type=jnp.float32) + b1_ref[...],
        0.0)                                                 # (TB, H1)
    # last layer has output width 1 -> VPU mul + lane reduce, not MXU
    h2 = jnp.maximum(
        jnp.sum(h * w2_ref[...], axis=-1, keepdims=True) + b2_ref[...], 0.0)  # (TB, 1)

    # linear_outs.add_(mlp(bi_pooling(emb)))
    out_ref[...] = lin + h2


@functools.partial(jax.jit, static_argnames=("block_b",))
def nfm_forward(cont, emb_fbe, w_cont_row, w_emb_fields, b_lin,
                w1, b1, w2_row, b2, *, block_b=128):
    """cont: (B, n_cont) f32; emb_fbe: (F, B, E) f32; weights pre-split/reshaped."""
    F, B, E = emb_fbe.shape
    n_cont = cont.shape[1]
    H1 = w1.shape[1]

    # batch tile: multiple of 8 sublanes; pad batch up to a multiple of the tile
    tb = block_b if B >= block_b else _round_up(B, 8)
    padded_b = _round_up(B, tb)
    if padded_b != B:
        cont = jnp.pad(cont, ((0, padded_b - B), (0, 0)))
        emb_fbe = jnp.pad(emb_fbe, ((0, 0), (0, padded_b - B), (0, 0)))

    grid = (padded_b // tb,)

    def full(shape):
        # small weights: full-array resident block, same for every grid step
        return pl.BlockSpec(shape, lambda i: (0,) * len(shape))

    out = pl.pallas_call(
        nfm_kernel,
        out_shape=jax.ShapeDtypeStruct((padded_b, 1), jnp.float32),
        grid=grid,
        in_specs=[
            pl.BlockSpec((tb, n_cont), lambda i: (i, 0)),     # cont, batch-tiled
            pl.BlockSpec((F, tb, E), lambda i: (0, i, 0)),    # emb (F,B,E), batch-tiled
            full((1, n_cont)),                                # w_cont_row
            full((F, E)),                                     # w_emb_fields
            full((1, 1)),                                     # b_lin
            full((E, H1)),                                    # w1
            full((1, H1)),                                    # b1
            full((1, H1)),                                    # w2_row
            full((1, 1)),                                     # b2
        ],
        out_specs=pl.BlockSpec((tb, 1), lambda i: (i, 0)),
        compiler_params=pltpu.CompilerParams(
            dimension_semantics=("parallel",),    # shard batch tiles across TCs (v7x)
            vmem_limit_bytes=64 * 1024 * 1024,    # allow big tiles even on v5e's 16 MiB default
        ),
    )(cont, emb_fbe, w_cont_row, w_emb_fields, b_lin, w1, b1, w2_row, b2)

    return out[:B]


def nfm_reference(cont, emb_bfe, w_lin, b_lin, w1, b1, w2, b2):
    """Plain-JAX reference mirroring the PyTorch forward (emb in torch (B,F,E) order)."""
    B = cont.shape[0]
    lin_in = jnp.concatenate([cont, emb_bfe.reshape(B, -1)], axis=1)
    lin = lin_in @ w_lin + b_lin
    s = emb_bfe.sum(axis=1)
    sq = (emb_bfe * emb_bfe).sum(axis=1)
    bi = 0.5 * (s * s - sq)
    h = jnp.maximum(bi @ w1 + b1, 0.0)
    h = jnp.maximum(h @ w2 + b2, 0.0)
    return lin + h


if __name__ == "__main__":
    # ---- synthetic NFM configuration: 3 categorical fields + 2 continuous cols
    B = 256
    emb_dim = 16
    deep_emb_inputs = [("cat0", 5, emb_dim), ("cat1", 7, emb_dim), ("cat2", 11, emb_dim)]
    deep_column_idx = {"cat0": 0, "cat1": 1, "cat2": 2, "cont0": 3, "cont1": 4}
    deep_continuous_cols = ["cont0", "cont1"]
    deep_hidden_dims = [32, 1]                      # MLP: emb_dim -> 32 -> 1
    F = len(deep_emb_inputs)
    n_cont = len(deep_continuous_cols)
    lin_in_dim = n_cont + F * emb_dim               # EmbeddingLayer.out_dim

    key = jax.random.PRNGKey(0)
    keys = jax.random.split(key, 16)

    # deterministic synthetic parameters
    emb_tables = [0.1 * jax.random.normal(keys[i], (vocab, emb_dim), jnp.float32)
                  for i, (_, vocab, _) in enumerate(deep_emb_inputs)]
    w_lin = 0.1 * jax.random.normal(keys[3], (lin_in_dim, 1), jnp.float32)
    b_lin = 0.1 * jax.random.normal(keys[4], (1, 1), jnp.float32)
    w1 = 0.1 * jax.random.normal(keys[5], (emb_dim, deep_hidden_dims[0]), jnp.float32)
    b1 = 0.1 * jax.random.normal(keys[6], (1, deep_hidden_dims[0]), jnp.float32)
    w2 = 0.1 * jax.random.normal(keys[7], (deep_hidden_dims[0], 1), jnp.float32)
    b2 = 0.1 * jax.random.normal(keys[8], (1, 1), jnp.float32)

    # ---- synthetic x['deep']: categorical ids stored as floats + continuous cols
    cat_ids = jnp.stack(
        [jax.random.randint(keys[9 + i], (B,), 0, deep_emb_inputs[i][1]) for i in range(F)],
        axis=1).astype(jnp.float32)
    cont_vals = jax.random.normal(keys[12], (B, n_cont), jnp.float32)
    x_deep = jnp.concatenate([cat_ids, cont_vals], axis=1)          # (B, 5) float32

    # ---- plain-JAX glue: column selection + embedding gather (data-dependent)
    # TODO(synk): gather could move in-kernel via PrefetchScalarGridSpec; kept in JAX glue.
    cont_outs = x_deep[:, [deep_column_idx[c] for c in deep_continuous_cols]]
    emb_bfe = jnp.stack(
        [jnp.take(emb_tables[f], x_deep[:, deep_column_idx[name]].astype(jnp.int32), axis=0)
         for f, (name, _, _) in enumerate(deep_emb_inputs)],
        axis=1).astype(jnp.float32)                                 # (B, F, E), torch order
    emb_fbe = jnp.transpose(emb_bfe, (1, 0, 2))                     # (F, B, E) for the kernel

    # pre-split the wide-Linear weight (torch.cat order: [cont | flattened emb])
    w_cont_row = w_lin[:n_cont, 0].reshape(1, n_cont)               # (1, n_cont)
    w_emb_fields = w_lin[n_cont:, 0].reshape(F, emb_dim)            # (F, E), row-major (f, e)
    w2_row = w2.reshape(1, -1)                                      # (1, H1)

    # ---- Pallas kernel
    out = nfm_forward(cont_outs, emb_fbe, w_cont_row, w_emb_fields, b_lin,
                      w1, b1, w2_row, b2, block_b=128)
    out = jax.block_until_ready(out)

    ref = nfm_reference(cont_outs, emb_bfe, w_lin, b_lin, w1, b1, w2, b2)
    assert out.shape == (B, 1) and out.dtype == jnp.float32
    assert jnp.allclose(out, ref, atol=1e-5, rtol=1e-5), (out[:4], ref[:4])

    print("KERNEL_OK")
</pallas_src>

<mosaic_0001>
module attributes {stable_mosaic.version = 11 : i64} {
  func.func @nfm_kernel(%arg0: i32, %arg1: memref<128x2xf32, #tpu.memory_space<vmem>>, %arg2: memref<3x128x16xf32, #tpu.memory_space<vmem>>, %arg3: memref<1x2xf32, #tpu.memory_space<vmem>>, %arg4: memref<3x16xf32, #tpu.memory_space<vmem>>, %arg5: memref<1x1xf32, #tpu.memory_space<vmem>>, %arg6: memref<16x32xf32, #tpu.memory_space<vmem>>, %arg7: memref<1x32xf32, #tpu.memory_space<vmem>>, %arg8: memref<1x32xf32, #tpu.memory_space<vmem>>, %arg9: memref<1x1xf32, #tpu.memory_space<vmem>>, %arg10: memref<128x1xf32, #tpu.memory_space<vmem>>) attributes {dimension_semantics = [#tpu.dimension_semantics<parallel>], iteration_bounds = array<i64: 2>, scalar_prefetch = 0 : i64, scratch_operands = 0 : i64, tpu.core_type = #tpu.core_type<tc>, window_params = [{transform_indices = @transform_0, window_bounds = array<i64: 128, 2>}, {transform_indices = @transform_1, window_bounds = array<i64: 3, 128, 16>}, {pipeline_mode = #tpu.pipeline_mode<synchronous>, transform_indices = @transform_2, window_bounds = array<i64: 1, 2>}, {pipeline_mode = #tpu.pipeline_mode<synchronous>, transform_indices = @transform_3, window_bounds = array<i64: 3, 16>}, {pipeline_mode = #tpu.pipeline_mode<synchronous>, transform_indices = @transform_4, window_bounds = array<i64: 1, 1>}, {pipeline_mode = #tpu.pipeline_mode<synchronous>, transform_indices = @transform_5, window_bounds = array<i64: 16, 32>}, {pipeline_mode = #tpu.pipeline_mode<synchronous>, transform_indices = @transform_6, window_bounds = array<i64: 1, 32>}, {pipeline_mode = #tpu.pipeline_mode<synchronous>, transform_indices = @transform_7, window_bounds = array<i64: 1, 32>}, {pipeline_mode = #tpu.pipeline_mode<synchronous>, transform_indices = @transform_8, window_bounds = array<i64: 1, 1>}, {transform_indices = @transform_9, window_bounds = array<i64: 128, 1>}]} {
    %c0 = arith.constant 0 : index
    %c0_0 = arith.constant 0 : index
    %0 = vector.load %arg1[%c0, %c0_0] : memref<128x2xf32, #tpu.memory_space<vmem>>, vector<128x2xf32>
    %c0_1 = arith.constant 0 : index
    %c0_2 = arith.constant 0 : index
    %1 = vector.load %arg4[%c0_1, %c0_2] : memref<3x16xf32, #tpu.memory_space<vmem>>, vector<3x16xf32>
    %c0_3 = arith.constant 0 : index
    %c0_4 = arith.constant 0 : index
    %2 = vector.load %arg3[%c0_3, %c0_4] : memref<1x2xf32, #tpu.memory_space<vmem>>, vector<1x2xf32>
    %3 = vector.broadcast %2 : vector<1x2xf32> to vector<128x2xf32>
    %4 = arith.mulf %0, %3 : vector<128x2xf32>
    %cst = arith.constant dense<0.000000e+00> : vector<128xf32>
    %5 = vector.multi_reduction <add>, %4, %cst [1] : vector<128x2xf32> to vector<128xf32>
    %6 = vector.shape_cast %5 : vector<128xf32> to vector<128x1xf32>
    %c0_5 = arith.constant 0 : index
    %c0_6 = arith.constant 0 : index
    %c0_7 = arith.constant 0 : index
    %7 = vector.load %arg2[%c0_5, %c0_6, %c0_7] : memref<3x128x16xf32, #tpu.memory_space<vmem>>, vector<1x128x16xf32>
    %8 = vector.shape_cast %7 : vector<1x128x16xf32> to vector<128x16xf32>
    %9 = arith.mulf %8, %8 : vector<128x16xf32>
    %10 = vector.extract_strided_slice %1 {offsets = [0, 0], sizes = [1, 16], strides = [1, 1]} : vector<3x16xf32> to vector<1x16xf32>
    %11 = vector.broadcast %10 : vector<1x16xf32> to vector<128x16xf32>
    %12 = arith.mulf %8, %11 : vector<128x16xf32>
    %c1 = arith.constant 1 : index
    %c0_8 = arith.constant 0 : index
    %c0_9 = arith.constant 0 : index
    %13 = vector.load %arg2[%c1, %c0_8, %c0_9] : memref<3x128x16xf32, #tpu.memory_space<vmem>>, vector<1x128x16xf32>
    %14 = vector.shape_cast %13 : vector<1x128x16xf32> to vector<128x16xf32>
    %15 = arith.addf %8, %14 : vector<128x16xf32>
    %16 = arith.mulf %14, %14 : vector<128x16xf32>
    %17 = arith.addf %9, %16 : vector<128x16xf32>
    %18 = vector.extract_strided_slice %1 {offsets = [1, 0], sizes = [1, 16], strides = [1, 1]} : vector<3x16xf32> to vector<1x16xf32>
    %19 = vector.broadcast %18 : vector<1x16xf32> to vector<128x16xf32>
    %20 = arith.mulf %14, %19 : vector<128x16xf32>
    %21 = arith.addf %12, %20 : vector<128x16xf32>
    %c2 = arith.constant 2 : index
    %c0_10 = arith.constant 0 : index
    %c0_11 = arith.constant 0 : index
    %22 = vector.load %arg2[%c2, %c0_10, %c0_11] : memref<3x128x16xf32, #tpu.memory_space<vmem>>, vector<1x128x16xf32>
    %23 = vector.shape_cast %22 : vector<1x128x16xf32> to vector<128x16xf32>
    %24 = arith.addf %15, %23 : vector<128x16xf32>
    %25 = arith.mulf %23, %23 : vector<128x16xf32>
    %26 = arith.addf %17, %25 : vector<128x16xf32>
    %27 = vector.extract_strided_slice %1 {offsets = [2, 0], sizes = [1, 16], strides = [1, 1]} : vector<3x16xf32> to vector<1x16xf32>
    %28 = vector.broadcast %27 : vector<1x16xf32> to vector<128x16xf32>
    %29 = arith.mulf %23, %28 : vector<128x16xf32>
    %30 = arith.addf %21, %29 : vector<128x16xf32>
    %cst_12 = arith.constant dense<0.000000e+00> : vector<128xf32>
    %31 = vector.multi_reduction <add>, %30, %cst_12 [1] : vector<128x16xf32> to vector<128xf32>
    %32 = vector.shape_cast %31 : vector<128xf32> to vector<128x1xf32>
    %33 = arith.addf %6, %32 : vector<128x1xf32>
    %c0_13 = arith.constant 0 : index
    %c0_14 = arith.constant 0 : index
    %34 = vector.load %arg5[%c0_13, %c0_14] : memref<1x1xf32, #tpu.memory_space<vmem>>, vector<1x1xf32>
    %35 = vector.broadcast %34 : vector<1x1xf32> to vector<128x1xf32>
    %36 = arith.addf %33, %35 : vector<128x1xf32>
    %37 = arith.mulf %24, %24 : vector<128x16xf32>
    %38 = arith.subf %37, %26 : vector<128x16xf32>
    %cst_15 = arith.constant 5.000000e-01 : f32
    %39 = vector.broadcast %cst_15 : f32 to vector<128x16xf32>
    %40 = arith.mulf %39, %38 : vector<128x16xf32>
    %c0_16 = arith.constant 0 : index
    %c0_17 = arith.constant 0 : index
    %41 = vector.load %arg6[%c0_16, %c0_17] : memref<16x32xf32, #tpu.memory_space<vmem>>, vector<16x32xf32>
    %cst_18 = arith.constant dense<0.000000e+00> : vector<128x32xf32>
    %42 = tpu.matmul %40, %41, %cst_18 {dimension_numbers = #tpu.dot_dimension_numbers<[1], [0], [0], [1], [0, 0, 1, 1], [], []>} : vector<128x16xf32>, vector<16x32xf32>, vector<128x32xf32> -> vector<128x32xf32>
    %c0_19 = arith.constant 0 : index
    %c0_20 = arith.constant 0 : index
    %43 = vector.load %arg7[%c0_19, %c0_20] : memref<1x32xf32, #tpu.memory_space<vmem>>, vector<1x32xf32>
    %44 = vector.broadcast %43 : vector<1x32xf32> to vector<128x32xf32>
    %45 = arith.addf %42, %44 : vector<128x32xf32>
    %cst_21 = arith.constant 0.000000e+00 : f32
    %46 = vector.broadcast %cst_21 : f32 to vector<128x32xf32>
    %47 = arith.maximumf %45, %46 : vector<128x32xf32>
    %c0_22 = arith.constant 0 : index
    %c0_23 = arith.constant 0 : index
    %48 = vector.load %arg8[%c0_22, %c0_23] : memref<1x32xf32, #tpu.memory_space<vmem>>, vector<1x32xf32>
    %49 = vector.broadcast %48 : vector<1x32xf32> to vector<128x32xf32>
    %50 = arith.mulf %47, %49 : vector<128x32xf32>
    %cst_24 = arith.constant dense<0.000000e+00> : vector<128xf32>
    %51 = vector.multi_reduction <add>, %50, %cst_24 [1] : vector<128x32xf32> to vector<128xf32>
    %52 = vector.shape_cast %51 : vector<128xf32> to vector<128x1xf32>
    %c0_25 = arith.constant 0 : index
    %c0_26 = arith.constant 0 : index
    %53 = vector.load %arg9[%c0_25, %c0_26] : memref<1x1xf32, #tpu.memory_space<vmem>>, vector<1x1xf32>
    %54 = vector.broadcast %53 : vector<1x1xf32> to vector<128x1xf32>
    %55 = arith.addf %52, %54 : vector<128x1xf32>
    %cst_27 = arith.constant 0.000000e+00 : f32
    %56 = vector.broadcast %cst_27 : f32 to vector<128x1xf32>
    %57 = arith.maximumf %55, %56 : vector<128x1xf32>
    %58 = arith.addf %36, %57 : vector<128x1xf32>
    %c0_28 = arith.constant 0 : index
    %c0_29 = arith.constant 0 : index
    %59 = vector.load %arg10[%c0_28, %c0_29] : memref<128x1xf32, #tpu.memory_space<vmem>>, vector<128x1xf32>
    tpu.vector_store %arg10[%c0_28, %c0_29], %58 {strides = array<i32>} : memref<128x1xf32, #tpu.memory_space<vmem>>, vector<128x1xf32>,
    return
  }
  func.func @transform_0(%arg0: i32) -> (i32, i32) {
    %c0_i32 = arith.constant 0 : i32
    %c0_i32_0 = arith.constant 0 : i32
    return %arg0, %c0_i32 : i32, i32
  }
  func.func @transform_1(%arg0: i32) -> (i32, i32, i32) {
    %c0_i32 = arith.constant 0 : i32
    %c0_i32_0 = arith.constant 0 : i32
    %c0_i32_1 = arith.constant 0 : i32
    return %c0_i32, %arg0, %c0_i32_0 : i32, i32, i32
  }
  func.func @transform_2(%arg0: i32) -> (i32, i32) {
    %c0_i32 = arith.constant 0 : i32
    %c0_i32_0 = arith.constant 0 : i32
    %c0_i32_1 = arith.constant 0 : i32
    return %c0_i32, %c0_i32_0 : i32, i32
  }
  func.func @transform_3(%arg0: i32) -> (i32, i32) {
    %c0_i32 = arith.constant 0 : i32
    %c0_i32_0 = arith.constant 0 : i32
    %c0_i32_1 = arith.constant 0 : i32
    return %c0_i32, %c0_i32_0 : i32, i32
  }
  func.func @transform_4(%arg0: i32) -> (i32, i32) {
    %c0_i32 = arith.constant 0 : i32
    %c0_i32_0 = arith.constant 0 : i32
    %c0_i32_1 = arith.constant 0 : i32
    return %c0_i32, %c0_i32_0 : i32, i32
  }
  func.func @transform_5(%arg0: i32) -> (i32, i32) {
    %c0_i32 = arith.constant 0 : i32
    %c0_i32_0 = arith.constant 0 : i32
    %c0_i32_1 = arith.constant 0 : i32
    return %c0_i32, %c0_i32_0 : i32, i32
  }
  func.func @transform_6(%arg0: i32) -> (i32, i32) {
    %c0_i32 = arith.constant 0 : i32
    %c0_i32_0 = arith.constant 0 : i32
    %c0_i32_1 = arith.constant 0 : i32
    return %c0_i32, %c0_i32_0 : i32, i32
  }
  func.func @transform_7(%arg0: i32) -> (i32, i32) {
    %c0_i32 = arith.constant 0 : i32
    %c0_i32_0 = arith.constant 0 : i32
    %c0_i32_1 = arith.constant 0 : i32
    return %c0_i32, %c0_i32_0 : i32, i32
  }
  func.func @transform_8(%arg0: i32) -> (i32, i32) {
    %c0_i32 = arith.constant 0 : i32
    %c0_i32_0 = arith.constant 0 : i32
    %c0_i32_1 = arith.constant 0 : i32
    return %c0_i32, %c0_i32_0 : i32, i32
  }
  func.func @transform_9(%arg0: i32) -> (i32, i32) {
    %c0_i32 = arith.constant 0 : i32
    %c0_i32_0 = arith.constant 0 : i32
    return %arg0, %c0_i32 : i32, i32
  }
}

</mosaic_0001>

<llo_original>
// kernel: nfm_forward.1
$region0: #{nfm_forward.1}
  #allocation0 [shape = 'u32[]', space=smem, size = 0x4, offset = 0x4, fixed_abs, tag = 'smem constant byte address 0x4 - core index']
  #allocation1 [shape = 'u32[144,128]{1,0:T(1,128)}', space=vmem, size = 0x12000, scoped, tag = 'internal scratch']
  #allocation2 [shape = 'f32[1,1]{1,0:T(1,128)S(1)}', space=vmem, size = 0x200, scoped, tag = 'scoped memory for nfm_forward.1']
  #allocation3 [shape = 'f32[1,1]{1,0:T(1,128)S(1)}', space=vmem, size = 0x200, scoped, tag = 'scoped memory for nfm_forward.1']
  %s0 = inlined_call_operand.vmem [shape: f32[256,2], index: 0, kind: input, shape index: {}]
  %s1 = inlined_call_operand.vmem [shape: f32[3,256,16], index: 1, kind: input, shape index: {}]
  %s2 = inlined_call_operand.vmem [shape: f32[1,2], index: 2, kind: input, shape index: {}]
  %s3 = inlined_call_operand.vmem [shape: f32[3,16], index: 3, kind: input, shape index: {}]
  %s4 = inlined_call_operand.<no memory space> [shape: f32[1,1], index: 4, kind: input, shape index: {}]
  %s5 = inlined_call_operand.vmem [shape: f32[16,32], index: 5, kind: input, shape index: {}]
  %s6 = inlined_call_operand.vmem [shape: f32[1,32], index: 6, kind: input, shape index: {}]
  %s7 = inlined_call_operand.vmem [shape: f32[1,32], index: 7, kind: input, shape index: {}]
  %s8 = inlined_call_operand.<no memory space> [shape: f32[1,1], index: 8, kind: input, shape index: {}]
  %s9 = inlined_call_operand.vmem [shape: f32[256,1], index: 9, kind: output, shape index: {}]
  %s10 = sld [smem:[#allocation0]]
  $region107: #{nfm_forward.1} parent=0
    _
  %s12 = ssub.s32 1, %s10
  %s13 = scalar_select 0, %s12, %s10
  %v14 = vstv %s4
  %15 = vst [vmem:[#allocation2] sm:$0x1] %v14
  %v16 = vstv %s8
  %17 = vst [vmem:[#allocation3] sm:$0x1] %v16
  $region1: #{nfm_forward.1} parent=0
    #allocation4 [shape = 'u8[393216]{0}', space=vmem, size = 0x60000, scoped, tag = 'input window, operand 1']
    loop: start=0, step=1, limit=4
    $region2: #{nfm_forward.1} parent=1 // loop_pre_header
      _
    $region3: #{nfm_forward.1} parent=1 // loop_header
      %s19 = sphi 0, %s23
      %p20 = scmp.ge.s32.totalorder %s19, 4
      %s29 = sphi 0, %s31
      %s32 = sphi 0, %s29
      %s33 = sphi 0, %s32
      %s49 = sphi 0, %s33
      %s55 = sphi 0, %s57
      %s58 = sphi 0, %s55
      %s59 = sphi 0, %s58
      %s75 = sphi 0, %s59
      %s79 = sphi 0, %s79
      %s81 = sphi 0, %s79
      %s82 = sphi 0, %s81
      %s96 = sphi 0, %s82
      %s100 = sphi 0, %s100
      %s102 = sphi 0, %s100
      %s103 = sphi 0, %s102
      %s117 = sphi 0, %s103
      %s121 = sphi 0, %s121
      %s123 = sphi 0, %s121
      %s124 = sphi 0, %s123
      %s138 = sphi 0, %s124
      %s142 = sphi 0, %s142
      %s144 = sphi 0, %s142
      %s145 = sphi 0, %s144
      %s159 = sphi 0, %s145
      %s163 = sphi 0, %s163
      %s165 = sphi 0, %s163
      %s166 = sphi 0, %s165
      %s180 = sphi 0, %s166
      %s184 = sphi 0, %s184
      %s186 = sphi 0, %s184
      %s187 = sphi 0, %s186
      %s201 = sphi 0, %s187
      %s205 = sphi 0, %s205
      %s207 = sphi 0, %s205
      %s208 = sphi 0, %s207
      %s222 = sphi 0, %s208
      %s228 = sphi 0, %s230
      %s231 = sphi 0, %s228
      %s232 = sphi 0, %s231
      %s248 = sphi 0, %s232
    $region4: #{nfm_forward.1} parent=1 // loop_header_branch
      %22 = sbr.rel (%p20) target = $region8
    $region5: #{nfm_forward.1} parent=1 // loop_body
      %s24 = ssub.s32 %s19, 1
      %s25 = ssub.s32 %s19, 2
      %s26 = sadd.s32 %s19, 1
      %s27 = ssub.s32 %s19, %s26
      %p28 = scmp.eq.s32.totalorder %s27, 0
      %s30 = sadd.s32 %s29, 1
      %s31 = scalar_select %p28, %s29, %s30
      %p34 = pneg %p28
      %p35 = scmp.eq.s32.totalorder %s19, 1
      %p36 = por %p34, %p35
      %p37 = scmp.ne.s32.totalorder %s29, %s32
      %p38 = scmp.eq.s32.totalorder %s19, 0
      %p39 = por %p37, %p38
      %p40 = scmp.ne.s32.totalorder %s29, %s32
      %p41 = scmp.eq.s32.totalorder %s24, 1
      %p42 = por %p40, %p41
      %p43 = scmp.ne.s32.totalorder %s32, %s33
      %p44 = scmp.eq.s32.totalorder %s24, 0
      %p45 = por %p43, %p44
      %p46 = scmp.ne.s32.totalorder %s32, %s33
      %p47 = scmp.eq.s32.totalorder %s25, 1
      %p48 = por %p46, %p47
      %p50 = scmp.ne.s32.totalorder %s33, %s49
      %p51 = scmp.eq.s32.totalorder %s25, 0
      %p52 = por %p50, %p51
      %s53 = ssub.s32 %s19, %s26
      %p54 = scmp.eq.s32.totalorder %s53, 0
      %s56 = sadd.s32 %s55, 1
      %s57 = scalar_select %p54, %s55, %s56
      %p60 = pneg %p54
      %p61 = scmp.eq.s32.totalorder %s19, 1
      %p62 = por %p60, %p61
      %p63 = scmp.ne.s32.totalorder %s55, %s58
      %p64 = scmp.eq.s32.totalorder %s19, 0
      %p65 = por %p63, %p64
      %p66 = scmp.ne.s32.totalorder %s55, %s58
      %p67 = scmp.eq.s32.totalorder %s24, 1
      %p68 = por %p66, %p67
      %p69 = scmp.ne.s32.totalorder %s58, %s59
      %p70 = scmp.eq.s32.totalorder %s24, 0
      %p71 = por %p69, %p70
      %p72 = scmp.ne.s32.totalorder %s58, %s59
      %p73 = scmp.eq.s32.totalorder %s25, 1
      %p74 = por %p72, %p73
      %p76 = scmp.ne.s32.totalorder %s59, %s75
      %p77 = scmp.eq.s32.totalorder %s25, 0
      %p78 = por %p76, %p77
      %s80 = sadd.s32 %s79, 1
      %p83 = scmp.eq.s32.totalorder %s19, 1
      %p84 = scmp.ne.s32.totalorder %s79, %s81
      %p85 = scmp.eq.s32.totalorder %s19, 0
      %p86 = por %p84, %p85
      %p87 = scmp.ne.s32.totalorder %s79, %s81
      %p88 = scmp.eq.s32.totalorder %s24, 1
      %p89 = por %p87, %p88
      %p90 = scmp.ne.s32.totalorder %s81, %s82
      %p91 = scmp.eq.s32.totalorder %s24, 0
      %p92 = por %p90, %p91
      %p93 = scmp.ne.s32.totalorder %s81, %s82
      %p94 = scmp.eq.s32.totalorder %s25, 1
      %p95 = por %p93, %p94
      %p97 = scmp.ne.s32.totalorder %s82, %s96
      %p98 = scmp.eq.s32.totalorder %s25, 0
      %p99 = por %p97, %p98
      %s101 = sadd.s32 %s100, 1
      %p104 = scmp.eq.s32.totalorder %s19, 1
      %p105 = scmp.ne.s32.totalorder %s100, %s102
      %p106 = scmp.eq.s32.totalorder %s19, 0
      %p107 = por %p105, %p106
      %p108 = scmp.ne.s32.totalorder %s100, %s102
      %p109 = scmp.eq.s32.totalorder %s24, 1
      %p110 = por %p108, %p109
      %p111 = scmp.ne.s32.totalorder %s102, %s103
      %p112 = scmp.eq.s32.totalorder %s24, 0
      %p113 = por %p111, %p112
      %p114 = scmp.ne.s32.totalorder %s102, %s103
      %p115 = scmp.eq.s32.totalorder %s25, 1
      %p116 = por %p114, %p115
      %p118 = scmp.ne.s32.totalorder %s103, %s117
      %p119 = scmp.eq.s32.totalorder %s25, 0
      %p120 = por %p118, %p119
      %s122 = sadd.s32 %s121, 1
      %p125 = scmp.eq.s32.totalorder %s19, 1
      %p126 = scmp.ne.s32.totalorder %s121, %s123
      %p127 = scmp.eq.s32.totalorder %s19, 0
      %p128 = por %p126, %p127
      %p129 = scmp.ne.s32.totalorder %s121, %s123
      %p130 = scmp.eq.s32.totalorder %s24, 1
      %p131 = por %p129, %p130
      %p132 = scmp.ne.s32.totalorder %s123, %s124
      %p133 = scmp.eq.s32.totalorder %s24, 0
      %p134 = por %p132, %p133
      %p135 = scmp.ne.s32.totalorder %s123, %s124
      %p136 = scmp.eq.s32.totalorder %s25, 1
      %p137 = por %p135, %p136
      %p139 = scmp.ne.s32.totalorder %s124, %s138
      %p140 = scmp.eq.s32.totalorder %s25, 0
      %p141 = por %p139, %p140
      %s143 = sadd.s32 %s142, 1
      %p146 = scmp.eq.s32.totalorder %s19, 1
      %p147 = scmp.ne.s32.totalorder %s142, %s144
      %p148 = scmp.eq.s32.totalorder %s19, 0
      %p149 = por %p147, %p148
      %p150 = scmp.ne.s32.totalorder %s142, %s144
      %p151 = scmp.eq.s32.totalorder %s24, 1
      %p152 = por %p150, %p151
      %p153 = scmp.ne.s32.totalorder %s144, %s145
      %p154 = scmp.eq.s32.totalorder %s24, 0
      %p155 = por %p153, %p154
      %p156 = scmp.ne.s32.totalorder %s144, %s145
      %p157 = scmp.eq.s32.totalorder %s25, 1
      %p158 = por %p156, %p157
      %p160 = scmp.ne.s32.totalorder %s145, %s159
      %p161 = scmp.eq.s32.totalorder %s25, 0
      %p162 = por %p160, %p161
      %s164 = sadd.s32 %s163, 1
      %p167 = scmp.eq.s32.totalorder %s19, 1
      %p168 = scmp.ne.s32.totalorder %s163, %s165
      %p169 = scmp.eq.s32.totalorder %s19, 0
      %p170 = por %p168, %p169
      %p171 = scmp.ne.s32.totalorder %s163, %s165
      %p172 = scmp.eq.s32.totalorder %s24, 1
      %p173 = por %p171, %p172
      %p174 = scmp.ne.s32.totalorder %s165, %s166
      %p175 = scmp.eq.s32.totalorder %s24, 0
      %p176 = por %p174, %p175
      %p177 = scmp.ne.s32.totalorder %s165, %s166
      %p178 = scmp.eq.s32.totalorder %s25, 1
      %p179 = por %p177, %p178
      %p181 = scmp.ne.s32.totalorder %s166, %s180
      %p182 = scmp.eq.s32.totalorder %s25, 0
      %p183 = por %p181, %p182
      %s185 = sadd.s32 %s184, 1
      %p188 = scmp.eq.s32.totalorder %s19, 1
      %p189 = scmp.ne.s32.totalorder %s184, %s186
      %p190 = scmp.eq.s32.totalorder %s19, 0
      %p191 = por %p189, %p190
      %p192 = scmp.ne.s32.totalorder %s184, %s186
      %p193 = scmp.eq.s32.totalorder %s24, 1
      %p194 = por %p192, %p193
      %p195 = scmp.ne.s32.totalorder %s186, %s187
      %p196 = scmp.eq.s32.totalorder %s24, 0
      %p197 = por %p195, %p196
      %p198 = scmp.ne.s32.totalorder %s186, %s187
      %p199 = scmp.eq.s32.totalorder %s25, 1
      %p200 = por %p198, %p199
      %p202 = scmp.ne.s32.totalorder %s187, %s201
      %p203 = scmp.eq.s32.totalorder %s25, 0
      %p204 = por %p202, %p203
      %s206 = sadd.s32 %s205, 1
      %p209 = scmp.eq.s32.totalorder %s19, 1
      %p210 = scmp.ne.s32.totalorder %s205, %s207
      %p211 = scmp.eq.s32.totalorder %s19, 0
      %p212 = por %p210, %p211
      %p213 = scmp.ne.s32.totalorder %s205, %s207
      %p214 = scmp.eq.s32.totalorder %s24, 1
      %p215 = por %p213, %p214
      %p216 = scmp.ne.s32.totalorder %s207, %s208
      %p217 = scmp.eq.s32.totalorder %s24, 0
      %p218 = por %p216, %p217
      %p219 = scmp.ne.s32.totalorder %s207, %s208
      %p220 = scmp.eq.s32.totalorder %s25, 1
      %p221 = por %p219, %p220
      %p223 = scmp.ne.s32.totalorder %s208, %s222
      %p224 = scmp.eq.s32.totalorder %s25, 0
      %p225 = por %p223, %p224
      %s226 = ssub.s32 %s19, %s26
      %p227 = scmp.eq.s32.totalorder %s226, 0
      %s229 = sadd.s32 %s228, 1
      %s230 = scalar_select %p227, %s228, %s229
      %p233 = pneg %p227
      %p234 = scmp.eq.s32.totalorder %s19, 1
      %p235 = por %p233, %p234
      %p236 = scmp.ne.s32.totalorder %s228, %s231
      %p237 = scmp.eq.s32.totalorder %s19, 0
      %p238 = por %p236, %p237
      %p239 = scmp.ne.s32.totalorder %s228, %s231
      %p240 = scmp.eq.s32.totalorder %s24, 1
      %p241 = por %p239, %p240
      %p242 = scmp.ne.s32.totalorder %s231, %s232
      %p243 = scmp.eq.s32.totalorder %s24, 0
      %p244 = por %p242, %p243
      %p245 = scmp.ne.s32.totalorder %s231, %s232
      %p246 = scmp.eq.s32.totalorder %s25, 1
      %p247 = por %p245, %p246
      %p249 = scmp.ne.s32.totalorder %s232, %s248
      %p250 = scmp.eq.s32.totalorder %s25, 0
      %p251 = por %p249, %p250
      %p252 = scmp.le.s32.totalorder 1, %s19
      %p253 = scmp.lt.s32.totalorder %s19, 3
      %p254 = pnand %p252, %p253
      %p255 = pneg %p254
      // Predicated region
      $region9: #{nfm_forward.1} parent=5 // pred_check
        _
      $region10: #{nfm_forward.1} parent=5 // pred_check_branch
        %257 = sbr.rel (%p254) target = $region12
      $region11: #{nfm_forward.1} parent=5 // pred_region
        %s258 = ssub.s32 %s19, 1
        // Predicated region
        $region13: #{nfm_forward.1} parent=11 // pred_check
          %p259 = pneg %p92
        $region14: #{nfm_forward.1} parent=11 // pred_check_branch
          %261 = sbr.rel (%p259) target = $region16
        $region15: #{nfm_forward.1} parent=11 // pred_region
          _
        $region16: #{nfm_forward.1} parent=11 // pred_fallthru
          _
        // Predicated region
        $region17: #{nfm_forward.1} parent=11 // pred_check
          %p262 = pneg %p113
        $region18: #{nfm_forward.1} parent=11 // pred_check_branch
          %264 = sbr.rel (%p262) target = $region20
        $region19: #{nfm_forward.1} parent=11 // pred_region
          _
        $region20: #{nfm_forward.1} parent=11 // pred_fallthru
          _
        // Predicated region
        $region21: #{nfm_forward.1} parent=11 // pred_check
          %p265 = pneg %p134
        $region22: #{nfm_forward.1} parent=11 // pred_check_branch
          %267 = sbr.rel (%p265) target = $region24
        $region23: #{nfm_forward.1} parent=11 // pred_region
          _
        $region24: #{nfm_forward.1} parent=11 // pred_fallthru
          _
        // Predicated region
        $region25: #{nfm_forward.1} parent=11 // pred_check
          %p268 = pneg %p155
        $region26: #{nfm_forward.1} parent=11 // pred_check_branch
          %270 = sbr.rel (%p268) target = $region28
        $region27: #{nfm_forward.1} parent=11 // pred_region
          _
        $region28: #{nfm_forward.1} parent=11 // pred_fallthru
          _
        // Predicated region
        $region29: #{nfm_forward.1} parent=11 // pred_check
          %p271 = pneg %p176
        $region30: #{nfm_forward.1} parent=11 // pred_check_branch
          %273 = sbr.rel (%p271) target = $region32
        $region31: #{nfm_forward.1} parent=11 // pred_region
          _
        $region32: #{nfm_forward.1} parent=11 // pred_fallthru
          _
        // Predicated region
        $region33: #{nfm_forward.1} parent=11 // pred_check
          %p274 = pneg %p197
        $region34: #{nfm_forward.1} parent=11 // pred_check_branch
          %276 = sbr.rel (%p274) target = $region36
        $region35: #{nfm_forward.1} parent=11 // pred_region
          _
        $region36: #{nfm_forward.1} parent=11 // pred_fallthru
          _
        // Predicated region
        $region37: #{nfm_forward.1} parent=11 // pred_check
          %p277 = pneg %p218
        $region38: #{nfm_forward.1} parent=11 // pred_check_branch
          %279 = sbr.rel (%p277) target = $region40
        $region39: #{nfm_forward.1} parent=11 // pred_region
          _
        $region40: #{nfm_forward.1} parent=11 // pred_fallthru
          _
      $region12: #{nfm_forward.1} parent=5 // pred_fallthru
        _
      %p280 = scmp.lt.s32.totalorder %s19, 2
      // Predicated region
      $region41: #{nfm_forward.1} parent=5 // pred_check
        %p281 = pneg %p280
      $region42: #{nfm_forward.1} parent=5 // pred_check_branch
        %283 = sbr.rel (%p281) target = $region44
      $region43: #{nfm_forward.1} parent=5 // pred_region
        // Predicated region
        $region45: #{nfm_forward.1} parent=43 // pred_check
          %p284 = pneg %p39
        $region46: #{nfm_forward.1} parent=43 // pred_check_branch
          %286 = sbr.rel (%p284) target = $region48
        $region47: #{nfm_forward.1} parent=43 // pred_region
          %s287 = smul.u32 16, %s19
          %p288 = scmp.lt.s32.totalorder %s287, 31
          %s289 = scalar_select %p288, %s287, 31
          %s290 = smul.addr %s289, 8
          %s291 = scalar_lea.vmem %s0, %s290
          %s292 = smul.u32 16, %s19
        $region48: #{nfm_forward.1} parent=43 // pred_fallthru
          _
        // Predicated region
        $region49: #{nfm_forward.1} parent=43 // pred_check
          %p293 = pneg %p65
        $region50: #{nfm_forward.1} parent=43 // pred_check_branch
          %295 = sbr.rel (%p293) target = $region52
        $region51: #{nfm_forward.1} parent=43 // pred_region
          %s296 = sand.u32 %s55, 1
          %s297 = sand.u32 %s55, 1
          %s298 = smul.addr %s297, 384
          %s299 = scalar_lea.vmem [#allocation4], %s298
          %s300 = smul.u32 16, %s19
          %s301 = smul.addr %s300, 8
          %s302 = scalar_lea.vmem %s1, %s301
          // Predicated region
          $region53: #{nfm_forward.1} parent=51 // pred_check
            _
          $region54: #{nfm_forward.1} parent=51 // pred_check_branch
            %304 = sbr.rel (0) target = $region56
          $region55: #{nfm_forward.1} parent=51 // pred_region
            // Predicated region
            $region57: #{nfm_forward.1} parent=55 // pred_check
              _
            $region58: #{nfm_forward.1} parent=55 // pred_check_branch
              %306 = sbr.rel (0) target = $region60
            $region59: #{nfm_forward.1} parent=55 // pred_region
              // Predicated region
              $region72: #{nfm_forward.1} parent=59 // pred_check
                _
              $region73: #{nfm_forward.1} parent=59 // pred_check_branch
                %416 = sbr.rel (0) target = $region75
              $region74: #{nfm_forward.1} parent=59 // pred_region
                loop: start=0, step=1, limit=1
                $region76: #{nfm_forward.1} parent=74 // loop_pre_header
                  _
                $region77: #{nfm_forward.1} parent=74 // loop_header
                  %s418 = sphi 0, %s422
                  %p419 = scmp.ge.s32.totalorder %s418, 1
                  %s423 = sphi %s302, %s302
                  %s424 = sphi %s299, %s299
                $region78: #{nfm_forward.1} parent=74 // loop_header_branch
                  %421 = sbr.rel (%p419) target = $region82
                $region79: #{nfm_forward.1} parent=74 // loop_body
                  %v425 = vld [vmem:[%s423] sm:$0xff]
                  %426 = vst [vmem:[%s424] sm:$0xff] %v425
                  %v427 = vld [vmem:[%s423 + $0x8] sm:$0xff]
                  %428 = vst [vmem:[%s424 + $0x8] sm:$0xff] %v427
                  %v429 = vld [vmem:[%s423 + $0x10] sm:$0xff]
                  %430 = vst [vmem:[%s424 + $0x10] sm:$0xff] %v429
                  %v431 = vld [vmem:[%s423 + $0x18] sm:$0xff]
                  %432 = vst [vmem:[%s424 + $0x18] sm:$0xff] %v431
                  %v433 = vld [vmem:[%s423 + $0x20] sm:$0xff]
                  %434 = vst [vmem:[%s424 + $0x20] sm:$0xff] %v433
                  %v435 = vld [vmem:[%s423 + $0x28] sm:$0xff]
                  %436 = vst [vmem:[%s424 + $0x28] sm:$0xff] %v435
                  %v437 = vld [vmem:[%s423 + $0x30] sm:$0xff]
                  %438 = vst [vmem:[%s424 + $0x30] sm:$0xff] %v437
                  %v439 = vld [vmem:[%s423 + $0x38] sm:$0xff]
                  %440 = vst [vmem:[%s424 + $0x38] sm:$0xff] %v439
                  %v441 = vld [vmem:[%s423 + $0x40] sm:$0xff]
                  %442 = vst [vmem:[%s424 + $0x40] sm:$0xff] %v441
                  %v443 = vld [vmem:[%s423 + $0x48] sm:$0xff]
                  %444 = vst [vmem:[%s424 + $0x48] sm:$0xff] %v443
                  %v445 = vld [vmem:[%s423 + $0x50] sm:$0xff]
                  %446 = vst [vmem:[%s424 + $0x50] sm:$0xff] %v445
                  %v447 = vld [vmem:[%s423 + $0x58] sm:$0xff]
                  %448 = vst [vmem:[%s424 + $0x58] sm:$0xff] %v447
                  %v449 = vld [vmem:[%s423 + $0x60] sm:$0xff]
                  %450 = vst [vmem:[%s424 + $0x60] sm:$0xff] %v449
                  %v451 = vld [vmem:[%s423 + $0x68] sm:$0xff]
                  %452 = vst [vmem:[%s424 + $0x68] sm:$0xff] %v451
                  %v453 = vld [vmem:[%s423 + $0x70] sm:$0xff]
                  %454 = vst [vmem:[%s424 + $0x70] sm:$0xff] %v453
                  %v455 = vld [vmem:[%s423 + $0x78] sm:$0xff]
                  %456 = vst [vmem:[%s424 + $0x78] sm:$0xff] %v455
                  %v457 = vld [vmem:[%s423 + $0x100] sm:$0xff]
                  %458 = vst [vmem:[%s424 + $0x80] sm:$0xff] %v457
                  %v459 = vld [vmem:[%s423 + $0x108] sm:$0xff]
                  %460 = vst [vmem:[%s424 + $0x88] sm:$0xff] %v459
                  %v461 = vld [vmem:[%s423 + $0x110] sm:$0xff]
                  %462 = vst [vmem:[%s424 + $0x90] sm:$0xff] %v461
                  %v463 = vld [vmem:[%s423 + $0x118] sm:$0xff]
                  %464 = vst [vmem:[%s424 + $0x98] sm:$0xff] %v463
                  %v465 = vld [vmem:[%s423 + $0x120] sm:$0xff]
                  %466 = vst [vmem:[%s424 + $0xa0] sm:$0xff] %v465
                  %v467 = vld [vmem:[%s423 + $0x128] sm:$0xff]
                  %468 = vst [vmem:[%s424 + $0xa8] sm:$0xff] %v467
                  %v469 = vld [vmem:[%s423 + $0x130] sm:$0xff]
                  %470 = vst [vmem:[%s424 + $0xb0] sm:$0xff] %v469
                  %v471 = vld [vmem:[%s423 + $0x138] sm:$0xff]
                  %472 = vst [vmem:[%s424 + $0xb8] sm:$0xff] %v471
                  %v473 = vld [vmem:[%s423 + $0x140] sm:$0xff]
                  %474 = vst [vmem:[%s424 + $0xc0] sm:$0xff] %v473
                  %v475 = vld [vmem:[%s423 + $0x148] sm:$0xff]
                  %476 = vst [vmem:[%s424 + $0xc8] sm:$0xff] %v475
                  %v477 = vld [vmem:[%s423 + $0x150] sm:$0xff]
                  %478 = vst [vmem:[%s424 + $0xd0] sm:$0xff] %v477
                  %v479 = vld [vmem:[%s423 + $0x158] sm:$0xff]
                  %480 = vst [vmem:[%s424 + $0xd8] sm:$0xff] %v479
                  %v481 = vld [vmem:[%s423 + $0x160] sm:$0xff]
                  %482 = vst [vmem:[%s424 + $0xe0] sm:$0xff] %v481
                  %v483 = vld [vmem:[%s423 + $0x168] sm:$0xff]
                  %484 = vst [vmem:[%s424 + $0xe8] sm:$0xff] %v483
                  %v485 = vld [vmem:[%s423 + $0x170] sm:$0xff]
                  %486 = vst [vmem:[%s424 + $0xf0] sm:$0xff] %v485
                  %v487 = vld [vmem:[%s423 + $0x178] sm:$0xff]
                  %488 = vst [vmem:[%s424 + $0xf8] sm:$0xff] %v487
                  %v489 = vld [vmem:[%s423 + $0x200] sm:$0xff]
                  %490 = vst [vmem:[%s424 + $0x100] sm:$0xff] %v489
                  %v491 = vld [vmem:[%s423 + $0x208] sm:$0xff]
                  %492 = vst [vmem:[%s424 + $0x108] sm:$0xff] %v491
                  %v493 = vld [vmem:[%s423 + $0x210] sm:$0xff]
                  %494 = vst [vmem:[%s424 + $0x110] sm:$0xff] %v493
                  %v495 = vld [vmem:[%s423 + $0x218] sm:$0xff]
                  %496 = vst [vmem:[%s424 + $0x118] sm:$0xff] %v495
                  %v497 = vld [vmem:[%s423 + $0x220] sm:$0xff]
                  %498 = vst [vmem:[%s424 + $0x120] sm:$0xff] %v497
                  %v499 = vld [vmem:[%s423 + $0x228] sm:$0xff]
                  %500 = vst [vmem:[%s424 + $0x128] sm:$0xff] %v499
                  %v501 = vld [vmem:[%s423 + $0x230] sm:$0xff]
                  %502 = vst [vmem:[%s424 + $0x130] sm:$0xff] %v501
                  %v503 = vld [vmem:[%s423 + $0x238] sm:$0xff]
                  %504 = vst [vmem:[%s424 + $0x138] sm:$0xff] %v503
                  %v505 = vld [vmem:[%s423 + $0x240] sm:$0xff]
                  %506 = vst [vmem:[%s424 + $0x140] sm:$0xff] %v505
                  %v507 = vld [vmem:[%s423 + $0x248] sm:$0xff]
                  %508 = vst [vmem:[%s424 + $0x148] sm:$0xff] %v507
                  %v509 = vld [vmem:[%s423 + $0x250] sm:$0xff]
                  %510 = vst [vmem:[%s424 + $0x150] sm:$0xff] %v509
                  %v511 = vld [vmem:[%s423 + $0x258] sm:$0xff]
                  %512 = vst [vmem:[%s424 + $0x158] sm:$0xff] %v511
                  %v513 = vld [vmem:[%s423 + $0x260] sm:$0xff]
                  %514 = vst [vmem:[%s424 + $0x160] sm:$0xff] %v513
                  %v515 = vld [vmem:[%s423 + $0x268] sm:$0xff]
                  %516 = vst [vmem:[%s424 + $0x168] sm:$0xff] %v515
                  %v517 = vld [vmem:[%s423 + $0x270] sm:$0xff]
                  %518 = vst [vmem:[%s424 + $0x170] sm:$0xff] %v517
                  %v519 = vld [vmem:[%s423 + $0x278] sm:$0xff]
                  %520 = vst [vmem:[%s424 + $0x178] sm:$0xff] %v519
                $region80: #{nfm_forward.1} parent=74 // loop_footer
                  %s422 = sadd.s32 1, %s418
                $region81: #{nfm_forward.1} parent=74 // loop_footer_branch
                  %417 = sbr.rel target = $region77
                $region82: #{nfm_forward.1} parent=74 // loop_exit
                  _
              $region75: #{nfm_forward.1} parent=59 // pred_fallthru
                _
              // Predicated region
              $region83: #{nfm_forward.1} parent=59 // pred_check
                _
              $region84: #{nfm_forward.1} parent=59 // pred_check_branch
                %522 = sbr.rel target = $region86
              $region85: #{nfm_forward.1} parent=59 // pred_region
                _
              $region86: #{nfm_forward.1} parent=59 // pred_fallthru
                _
            $region60: #{nfm_forward.1} parent=55 // pred_fallthru
              _
            // Predicated region
            $region61: #{nfm_forward.1} parent=55 // pred_check
              _
            $region62: #{nfm_forward.1} parent=55 // pred_check_branch
              %308 = sbr.rel target = $region64
            $region63: #{nfm_forward.1} parent=55 // pred_region
              %s310 = ssub.s32 256, 1
              loop: start=0, step=1, limit=1
              $region65: #{nfm_forward.1} parent=63 // loop_pre_header
                _
              $region66: #{nfm_forward.1} parent=63 // loop_header
                %s312 = sphi 0, %s316
                %p313 = scmp.ge.s32.totalorder %s312, 1
                %s317 = sphi %s302, %s302
                %s318 = sphi %s299, %s299
              $region67: #{nfm_forward.1} parent=63 // loop_header_branch
                %315 = sbr.rel (%p313) target = $region71
              $region68: #{nfm_forward.1} parent=63 // loop_body
                %v319 = vld [vmem:[%s317] sm:%s310]
                %320 = vst [vmem:[%s318] sm:%s310] %v319
                %v321 = vld [vmem:[%s317 + $0x8] sm:%s310]
                %322 = vst [vmem:[%s318 + $0x8] sm:%s310] %v321
                %v323 = vld [vmem:[%s317 + $0x10] sm:%s310]
                %324 = vst [vmem:[%s318 + $0x10] sm:%s310] %v323
                %v325 = vld [vmem:[%s317 + $0x18] sm:%s310]
                %326 = vst [vmem:[%s318 + $0x18] sm:%s310] %v325
                %v327 = vld [vmem:[%s317 + $0x20] sm:%s310]
                %328 = vst [vmem:[%s318 + $0x20] sm:%s310] %v327
                %v329 = vld [vmem:[%s317 + $0x28] sm:%s310]
                %330 = vst [vmem:[%s318 + $0x28] sm:%s310] %v329
                %v331 = vld [vmem:[%s317 + $0x30] sm:%s310]
                %332 = vst [vmem:[%s318 + $0x30] sm:%s310] %v331
                %v333 = vld [vmem:[%s317 + $0x38] sm:%s310]
                %334 = vst [vmem:[%s318 + $0x38] sm:%s310] %v333
                %v335 = vld [vmem:[%s317 + $0x40] sm:%s310]
                %336 = vst [vmem:[%s318 + $0x40] sm:%s310] %v335
                %v337 = vld [vmem:[%s317 + $0x48] sm:%s310]
                %338 = vst [vmem:[%s318 + $0x48] sm:%s310] %v337
                %v339 = vld [vmem:[%s317 + $0x50] sm:%s310]
                %340 = vst [vmem:[%s318 + $0x50] sm:%s310] %v339
                %v341 = vld [vmem:[%s317 + $0x58] sm:%s310]
                %342 = vst [vmem:[%s318 + $0x58] sm:%s310] %v341
                %v343 = vld [vmem:[%s317 + $0x60] sm:%s310]
                %344 = vst [vmem:[%s318 + $0x60] sm:%s310] %v343
                %v345 = vld [vmem:[%s317 + $0x68] sm:%s310]
                %346 = vst [vmem:[%s318 + $0x68] sm:%s310] %v345
                %v347 = vld [vmem:[%s317 + $0x70] sm:%s310]
                %348 = vst [vmem:[%s318 + $0x70] sm:%s310] %v347
                %v349 = vld [vmem:[%s317 + $0x78] sm:%s310]
                %350 = vst [vmem:[%s318 + $0x78] sm:%s310] %v349
                %v351 = vld [vmem:[%s317 + $0x100] sm:%s310]
                %352 = vst [vmem:[%s318 + $0x80] sm:%s310] %v351
                %v353 = vld [vmem:[%s317 + $0x108] sm:%s310]
                %354 = vst [vmem:[%s318 + $0x88] sm:%s310] %v353
                %v355 = vld [vmem:[%s317 + $0x110] sm:%s310]
                %356 = vst [vmem:[%s318 + $0x90] sm:%s310] %v355
                %v357 = vld [vmem:[%s317 + $0x118] sm:%s310]
                %358 = vst [vmem:[%s318 + $0x98] sm:%s310] %v357
                %v359 = vld [vmem:[%s317 + $0x120] sm:%s310]
                %360 = vst [vmem:[%s318 + $0xa0] sm:%s310] %v359
                %v361 = vld [vmem:[%s317 + $0x128] sm:%s310]
                %362 = vst [vmem:[%s318 + $0xa8] sm:%s310] %v361
                %v363 = vld [vmem:[%s317 + $0x130] sm:%s310]
                %364 = vst [vmem:[%s318 + $0xb0] sm:%s310] %v363
                %v365 = vld [vmem:[%s317 + $0x138] sm:%s310]
                %366 = vst [vmem:[%s318 + $0xb8] sm:%s310] %v365
                %v367 = vld [vmem:[%s317 + $0x140] sm:%s310]
                %368 = vst [vmem:[%s318 + $0xc0] sm:%s310] %v367
                %v369 = vld [vmem:[%s317 + $0x148] sm:%s310]
                %370 = vst [vmem:[%s318 + $0xc8] sm:%s310] %v369
                %v371 = vld [vmem:[%s317 + $0x150] sm:%s310]
                %372 = vst [vmem:[%s318 + $0xd0] sm:%s310] %v371
                %v373 = vld [vmem:[%s317 + $0x158] sm:%s310]
                %374 = vst [vmem:[%s318 + $0xd8] sm:%s310] %v373
                %v375 = vld [vmem:[%s317 + $0x160] sm:%s310]
                %376 = vst [vmem:[%s318 + $0xe0] sm:%s310] %v375
                %v377 = vld [vmem:[%s317 + $0x168] sm:%s310]
                %378 = vst [vmem:[%s318 + $0xe8] sm:%s310] %v377
                %v379 = vld [vmem:[%s317 + $0x170] sm:%s310]
                %380 = vst [vmem:[%s318 + $0xf0] sm:%s310] %v379
                %v381 = vld [vmem:[%s317 + $0x178] sm:%s310]
                %382 = vst [vmem:[%s318 + $0xf8] sm:%s310] %v381
                %v383 = vld [vmem:[%s317 + $0x200] sm:%s310]
                %384 = vst [vmem:[%s318 + $0x100] sm:%s310] %v383
                %v385 = vld [vmem:[%s317 + $0x208] sm:%s310]
                %386 = vst [vmem:[%s318 + $0x108] sm:%s310] %v385
                %v387 = vld [vmem:[%s317 + $0x210] sm:%s310]
                %388 = vst [vmem:[%s318 + $0x110] sm:%s310] %v387
                %v389 = vld [vmem:[%s317 + $0x218] sm:%s310]
                %390 = vst [vmem:[%s318 + $0x118] sm:%s310] %v389
                %v391 = vld [vmem:[%s317 + $0x220] sm:%s310]
                %392 = vst [vmem:[%s318 + $0x120] sm:%s310] %v391
                %v393 = vld [vmem:[%s317 + $0x228] sm:%s310]
                %394 = vst [vmem:[%s318 + $0x128] sm:%s310] %v393
                %v395 = vld [vmem:[%s317 + $0x230] sm:%s310]
                %396 = vst [vmem:[%s318 + $0x130] sm:%s310] %v395
                %v397 = vld [vmem:[%s317 + $0x238] sm:%s310]
                %398 = vst [vmem:[%s318 + $0x138] sm:%s310] %v397
                %v399 = vld [vmem:[%s317 + $0x240] sm:%s310]
                %400 = vst [vmem:[%s318 + $0x140] sm:%s310] %v399
                %v401 = vld [vmem:[%s317 + $0x248] sm:%s310]
                %402 = vst [vmem:[%s318 + $0x148] sm:%s310] %v401
                %v403 = vld [vmem:[%s317 + $0x250] sm:%s310]
                %404 = vst [vmem:[%s318 + $0x150] sm:%s310] %v403
                %v405 = vld [vmem:[%s317 + $0x258] sm:%s310]
                %406 = vst [vmem:[%s318 + $0x158] sm:%s310] %v405
                %v407 = vld [vmem:[%s317 + $0x260] sm:%s310]
                %408 = vst [vmem:[%s318 + $0x160] sm:%s310] %v407
                %v409 = vld [vmem:[%s317 + $0x268] sm:%s310]
                %410 = vst [vmem:[%s318 + $0x168] sm:%s310] %v409
                %v411 = vld [vmem:[%s317 + $0x270] sm:%s310]
                %412 = vst [vmem:[%s318 + $0x170] sm:%s310] %v411
                %v413 = vld [vmem:[%s317 + $0x278] sm:%s310]
                %414 = vst [vmem:[%s318 + $0x178] sm:%s310] %v413
              $region69: #{nfm_forward.1} parent=63 // loop_footer
                %s316 = sadd.s32 1, %s312
              $region70: #{nfm_forward.1} parent=63 // loop_footer_branch
                %311 = sbr.rel target = $region66
              $region71: #{nfm_forward.1} parent=63 // loop_exit
                _
            $region64: #{nfm_forward.1} parent=55 // pred_fallthru
              _
          $region56: #{nfm_forward.1} parent=51 // pred_fallthru
            _
          %523 = vnop
        $region52: #{nfm_forward.1} parent=43 // pred_fallthru
          _
      $region44: #{nfm_forward.1} parent=5 // pred_fallthru
        _
      %p524 = scmp.le.s32.totalorder 1, %s19
      %p525 = scmp.lt.s32.totalorder %s19, 3
      %p526 = pnand %p524, %p525
      %p527 = pneg %p526
      // Predicated region
      $region87: #{nfm_forward.1} parent=5 // pred_check
        _
      $region88: #{nfm_forward.1} parent=5 // pred_check_branch
        %529 = sbr.rel (%p526) target = $region90
      $region89: #{nfm_forward.1} parent=5 // pred_region
        %s530 = ssub.s32 %s19, 1
        %s531 = sand.u32 %s58, 1
        %s532 = sand.u32 %s58, 1
        %s533 = smul.addr %s532, 384
        %s534 = scalar_lea.vmem [#allocation4], %s533
        // Predicated region
        $region91: #{nfm_forward.1} parent=89 // pred_check
          %p535 = pneg %p71
        $region92: #{nfm_forward.1} parent=89 // pred_check_branch
          %537 = sbr.rel (%p535) target = $region94
        $region93: #{nfm_forward.1} parent=89 // pred_region
          _
        $region94: #{nfm_forward.1} parent=89 // pred_fallthru
          _
        %s538 = smul.u32 16, %s24
        %p539 = scmp.lt.s32.totalorder %s538, 31
        %s540 = scalar_select %p539, %s538, 31
        %s541 = smul.addr %s540, 8
        %s542 = scalar_lea.vmem %s0, %s541
        %p543 = pneg %p45
        %p544 = pneg %p42
        %s545 = sand.u32 %s58, 1
        %s546 = sand.u32 %s58, 1
        %s547 = smul.addr %s546, 384
        %s548 = scalar_lea.vmem [#allocation4], %s547
        %p549 = pneg %p71
        %p550 = pneg %p68
        %p551 = pneg %p92
        %p552 = pneg %p89
        %p553 = pneg %p113
        %p554 = pneg %p110
        %p555 = pneg %p134
        %p556 = pneg %p131
        %p557 = pneg %p155
        %p558 = pneg %p152
        %p559 = pneg %p176
        %p560 = pneg %p173
        %p561 = pneg %p197
        %p562 = pneg %p194
        %p563 = pneg %p218
        %p564 = pneg %p215
        %p565 = pneg %p244
        %p566 = pneg %p241
        %s567 = smul.u32 16, %s24
        %p568 = scmp.lt.s32.totalorder %s567, 31
        %s569 = scalar_select %p568, %s567, 31
        %s570 = smul.addr %s569, 8
        %s571 = scalar_lea.vmem %s9, %s570
        %s572 = smul.u32 16, %s24
        %p573 = scmp.lt.s32.totalorder %s572, 31
        %s574 = scalar_select %p573, %s572, 31
        %s575 = smul.addr %s574, 8
        %s576 = scalar_lea.vmem %s0, %s575
        %s577 = smul.u32 16, %s24
        %s578 = smul.u32 16, %s24
        %s579 = smul.u32 16, %s24
        %p580 = scmp.lt.s32.totalorder %s579, 31
        %s581 = scalar_select %p580, %s579, 31
        %s582 = smul.addr %s581, 8
        %s583 = scalar_lea.vmem %s9, %s582
        %s584 = smul.u32 16, %s24
        %v585 = vld [vmem:[%s576] sm:$0xff]
        %v586 = vld [vmem:[%s576 + $0x8] sm:$0xff]
        %v587 = vld [vmem:[%s576 + $0x10] sm:$0xff]
        %v588 = vld [vmem:[%s576 + $0x18] sm:$0xff]
        %v589 = vld [vmem:[%s576 + $0x20] sm:$0xff]
        %v590 = vld [vmem:[%s576 + $0x28] sm:$0xff]
        %v591 = vld [vmem:[%s576 + $0x30] sm:$0xff]
        %v592 = vld [vmem:[%s576 + $0x38] sm:$0xff]
        %v593 = vld [vmem:[%s576 + $0x40] sm:$0xff]
        %v594 = vld [vmem:[%s576 + $0x48] sm:$0xff]
        %v595 = vld [vmem:[%s576 + $0x50] sm:$0xff]
        %v596 = vld [vmem:[%s576 + $0x58] sm:$0xff]
        %v597 = vld [vmem:[%s576 + $0x60] sm:$0xff]
        %v598 = vld [vmem:[%s576 + $0x68] sm:$0xff]
        %v599 = vld [vmem:[%s576 + $0x70] sm:$0xff]
        %v600 = vld [vmem:[%s576 + $0x78] sm:$0xff]
        %v601 = vld [vmem:[%s3] sm:$0x7]
        %v602 = vld [vmem:[%s2] sm:$0x1]
        %v604 = vlaneseq
        %v605 = vshrl.u32 %v604, 7
        %v606 = vsub.s32 0, %v605
        %v607 = vrot.slane %v602, %v606
        %v609 = vmul.f32 %v585, %v607
        %v610 = vmul.f32 %v586, %v607
        %v611 = vmul.f32 %v587, %v607
        %v612 = vmul.f32 %v588, %v607
        %v613 = vmul.f32 %v589, %v607
        %v614 = vmul.f32 %v590, %v607
        %v615 = vmul.f32 %v591, %v607
        %v616 = vmul.f32 %v592, %v607
        %v617 = vmul.f32 %v593, %v607
        %v618 = vmul.f32 %v594, %v607
        %v619 = vmul.f32 %v595, %v607
        %v620 = vmul.f32 %v596, %v607
        %v621 = vmul.f32 %v597, %v607
        %v622 = vmul.f32 %v598, %v607
        %v623 = vmul.f32 %v599, %v607
        %v624 = vmul.f32 %v600, %v607
        %vm625 = vcmask 15360
        %v626 = vsel %vm625, %v609, 0.0
        %627 = vadd.xlane.f32.xlu0 %v626
        %v628 = vpop.xlane.xlu0 %627
        %v629 = vsel %vm625, %v610, 0.0
        %630 = vadd.xlane.f32.xlu0 %v629
        %v631 = vpop.xlane.xlu0 %630
        %v632 = vsel %vm625, %v611, 0.0
        %633 = vadd.xlane.f32.xlu0 %v632
        %v634 = vpop.xlane.xlu0 %633
        %v635 = vsel %vm625, %v612, 0.0
        %636 = vadd.xlane.f32.xlu0 %v635
        %v637 = vpop.xlane.xlu0 %636
        %v638 = vsel %vm625, %v613, 0.0
        %639 = vadd.xlane.f32.xlu0 %v638
        %v640 = vpop.xlane.xlu0 %639
        %v641 = vsel %vm625, %v614, 0.0
        %642 = vadd.xlane.f32.xlu0 %v641
        %v643 = vpop.xlane.xlu0 %642
        %v644 = vsel %vm625, %v615, 0.0
        %645 = vadd.xlane.f32.xlu0 %v644
        %v646 = vpop.xlane.xlu0 %645
        %v647 = vsel %vm625, %v616, 0.0
        %648 = vadd.xlane.f32.xlu0 %v647
        %v649 = vpop.xlane.xlu0 %648
        %v650 = vsel %vm625, %v617, 0.0
        %651 = vadd.xlane.f32.xlu0 %v650
        %v652 = vpop.xlane.xlu0 %651
        %v653 = vsel %vm625, %v618, 0.0
        %654 = vadd.xlane.f32.xlu0 %v653
        %v655 = vpop.xlane.xlu0 %654
        %v656 = vsel %vm625, %v619, 0.0
        %657 = vadd.xlane.f32.xlu0 %v656
        %v658 = vpop.xlane.xlu0 %657
        %v659 = vsel %vm625, %v620, 0.0
        %660 = vadd.xlane.f32.xlu0 %v659
        %v661 = vpop.xlane.xlu0 %660
        %v662 = vsel %vm625, %v621, 0.0
        %663 = vadd.xlane.f32.xlu0 %v662
        %v664 = vpop.xlane.xlu0 %663
        %v665 = vsel %vm625, %v622, 0.0
        %666 = vadd.xlane.f32.xlu0 %v665
        %v667 = vpop.xlane.xlu0 %666
        %v668 = vsel %vm625, %v623, 0.0
        %669 = vadd.xlane.f32.xlu0 %v668
        %v670 = vpop.xlane.xlu0 %669
        %v671 = vsel %vm625, %v624, 0.0
        %672 = vadd.xlane.f32.xlu0 %v671
        %v673 = vpop.xlane.xlu0 %672
        %v674 = vld [vmem:[%s534] sm:$0xff]
        %v675 = vld [vmem:[%s534 + $0x8] sm:$0xff]
        %v676 = vld [vmem:[%s534 + $0x10] sm:$0xff]
        %v677 = vld [vmem:[%s534 + $0x18] sm:$0xff]
        %v678 = vld [vmem:[%s534 + $0x20] sm:$0xff]
        %v679 = vld [vmem:[%s534 + $0x28] sm:$0xff]
        %v680 = vld [vmem:[%s534 + $0x30] sm:$0xff]
        %v681 = vld [vmem:[%s534 + $0x38] sm:$0xff]
        %v682 = vld [vmem:[%s534 + $0x40] sm:$0xff]
        %v683 = vld [vmem:[%s534 + $0x48] sm:$0xff]
        %v684 = vld [vmem:[%s534 + $0x50] sm:$0xff]
        %v685 = vld [vmem:[%s534 + $0x58] sm:$0xff]
        %v686 = vld [vmem:[%s534 + $0x60] sm:$0xff]
        %v687 = vld [vmem:[%s534 + $0x68] sm:$0xff]
        %v688 = vld [vmem:[%s534 + $0x70] sm:$0xff]
        %v689 = vld [vmem:[%s534 + $0x78] sm:$0xff]
        %v690 = vmul.f32 %v674, %v674
        %v691 = vmul.f32 %v675, %v675
        %v692 = vmul.f32 %v676, %v676
        %v693 = vmul.f32 %v677, %v677
        %v694 = vmul.f32 %v678, %v678
        %v695 = vmul.f32 %v679, %v679
        %v696 = vmul.f32 %v680, %v680
        %v697 = vmul.f32 %v681, %v681
        %v698 = vmul.f32 %v682, %v682
        %v699 = vmul.f32 %v683, %v683
        %v700 = vmul.f32 %v684, %v684
        %v701 = vmul.f32 %v685, %v685
        %v702 = vmul.f32 %v686, %v686
        %v703 = vmul.f32 %v687, %v687
        %v704 = vmul.f32 %v688, %v688
        %v705 = vmul.f32 %v689, %v689
        %v706 = vlaneseq
        %v707 = vshrl.u32 %v706, 7
        %v708 = vsub.s32 0, %v707
        %v709 = vrot.slane %v601, %v708
        %v710 = vmul.f32 %v674, %v709
        %v711 = vmul.f32 %v675, %v709
        %v712 = vmul.f32 %v676, %v709
        %v713 = vmul.f32 %v677, %v709
        %v714 = vmul.f32 %v678, %v709
        %v715 = vmul.f32 %v679, %v709
        %v716 = vmul.f32 %v680, %v709
        %v717 = vmul.f32 %v681, %v709
        %v718 = vmul.f32 %v682, %v709
        %v719 = vmul.f32 %v683, %v709
        %v720 = vmul.f32 %v684, %v709
        %v721 = vmul.f32 %v685, %v709
        %v722 = vmul.f32 %v686, %v709
        %v723 = vmul.f32 %v687, %v709
        %v724 = vmul.f32 %v688, %v709
        %v725 = vmul.f32 %v689, %v709
        %s726 = scalar_lea.vmem %s534, 128 [#allocation4]
        %v727 = vld [vmem:[%s726] sm:$0xff]
        %v728 = vld [vmem:[%s726 + $0x8] sm:$0xff]
        %v729 = vld [vmem:[%s726 + $0x10] sm:$0xff]
        %v730 = vld [vmem:[%s726 + $0x18] sm:$0xff]
        %v731 = vld [vmem:[%s726 + $0x20] sm:$0xff]
        %v732 = vld [vmem:[%s726 + $0x28] sm:$0xff]
        %v733 = vld [vmem:[%s726 + $0x30] sm:$0xff]
        %v734 = vld [vmem:[%s726 + $0x38] sm:$0xff]
        %v735 = vld [vmem:[%s726 + $0x40] sm:$0xff]
        %v736 = vld [vmem:[%s726 + $0x48] sm:$0xff]
        %v737 = vld [vmem:[%s726 + $0x50] sm:$0xff]
        %v738 = vld [vmem:[%s726 + $0x58] sm:$0xff]
        %v739 = vld [vmem:[%s726 + $0x60] sm:$0xff]
        %v740 = vld [vmem:[%s726 + $0x68] sm:$0xff]
        %v741 = vld [vmem:[%s726 + $0x70] sm:$0xff]
        %v742 = vld [vmem:[%s726 + $0x78] sm:$0xff]
        %v743 = vadd.f32 %v674, %v727
        %v744 = vadd.f32 %v675, %v728
        %v745 = vadd.f32 %v676, %v729
        %v746 = vadd.f32 %v677, %v730
        %v747 = vadd.f32 %v678, %v731
        %v748 = vadd.f32 %v679, %v732
        %v749 = vadd.f32 %v680, %v733
        %v750 = vadd.f32 %v681, %v734
        %v751 = vadd.f32 %v682, %v735
        %v752 = vadd.f32 %v683, %v736
        %v753 = vadd.f32 %v684, %v737
        %v754 = vadd.f32 %v685, %v738
        %v755 = vadd.f32 %v686, %v739
        %v756 = vadd.f32 %v687, %v740
        %v757 = vadd.f32 %v688, %v741
        %v758 = vadd.f32 %v689, %v742
        %v759 = vmul.f32 %v727, %v727
        %v760 = vmul.f32 %v728, %v728
        %v761 = vmul.f32 %v729, %v729
        %v762 = vmul.f32 %v730, %v730
        %v763 = vmul.f32 %v731, %v731
        %v764 = vmul.f32 %v732, %v732
        %v765 = vmul.f32 %v733, %v733
        %v766 = vmul.f32 %v734, %v734
        %v767 = vmul.f32 %v735, %v735
        %v768 = vmul.f32 %v736, %v736
        %v769 = vmul.f32 %v737, %v737
        %v770 = vmul.f32 %v738, %v738
        %v771 = vmul.f32 %v739, %v739
        %v772 = vmul.f32 %v740, %v740
        %v773 = vmul.f32 %v741, %v741
        %v774 = vmul.f32 %v742, %v742
        %v775 = vadd.f32 %v690, %v759
        %v776 = vadd.f32 %v691, %v760
        %v777 = vadd.f32 %v692, %v761
        %v778 = vadd.f32 %v693, %v762
        %v779 = vadd.f32 %v694, %v763
        %v780 = vadd.f32 %v695, %v764
        %v781 = vadd.f32 %v696, %v765
        %v782 = vadd.f32 %v697, %v766
        %v783 = vadd.f32 %v698, %v767
        %v784 = vadd.f32 %v699, %v768
        %v785 = vadd.f32 %v700, %v769
        %v786 = vadd.f32 %v701, %v770
        %v787 = vadd.f32 %v702, %v771
        %v788 = vadd.f32 %v703, %v772
        %v789 = vadd.f32 %v704, %v773
        %v790 = vadd.f32 %v705, %v774
        %v791 = vlaneseq
        %v792 = vshrl.u32 %v791, 7
        %v793 = vsub.s32 1, %v792
        %v794 = vrot.slane %v601, %v793
        %v795 = vmul.f32 %v727, %v794
        %v796 = vmul.f32 %v728, %v794
        %v797 = vmul.f32 %v729, %v794
        %v798 = vmul.f32 %v730, %v794
        %v799 = vmul.f32 %v731, %v794
        %v800 = vmul.f32 %v732, %v794
        %v801 = vmul.f32 %v733, %v794
        %v802 = vmul.f32 %v734, %v794
        %v803 = vmul.f32 %v735, %v794
        %v804 = vmul.f32 %v736, %v794
        %v805 = vmul.f32 %v737, %v794
        %v806 = vmul.f32 %v738, %v794
        %v807 = vmul.f32 %v739, %v794
        %v808 = vmul.f32 %v740, %v794
        %v809 = vmul.f32 %v741, %v794
        %v810 = vmul.f32 %v742, %v794
        %v811 = vadd.f32 %v710, %v795
        %v812 = vadd.f32 %v711, %v796
        %v813 = vadd.f32 %v712, %v797
        %v814 = vadd.f32 %v713, %v798
        %v815 = vadd.f32 %v714, %v799
        %v816 = vadd.f32 %v715, %v800
        %v817 = vadd.f32 %v716, %v801
        %v818 = vadd.f32 %v717, %v802
        %v819 = vadd.f32 %v718, %v803
        %v820 = vadd.f32 %v719, %v804
        %v821 = vadd.f32 %v720, %v805
        %v822 = vadd.f32 %v721, %v806
        %v823 = vadd.f32 %v722, %v807
        %v824 = vadd.f32 %v723, %v808
        %v825 = vadd.f32 %v724, %v809
        %v826 = vadd.f32 %v725, %v810
        %s827 = scalar_lea.vmem %s534, 256 [#allocation4]
        %v828 = vld [vmem:[%s827] sm:$0xff]
        %v829 = vld [vmem:[%s827 + $0x8] sm:$0xff]
        %v830 = vld [vmem:[%s827 + $0x10] sm:$0xff]
        %v831 = vld [vmem:[%s827 + $0x18] sm:$0xff]
        %v832 = vld [vmem:[%s827 + $0x20] sm:$0xff]
        %v833 = vld [vmem:[%s827 + $0x28] sm:$0xff]
        %v834 = vld [vmem:[%s827 + $0x30] sm:$0xff]
        %v835 = vld [vmem:[%s827 + $0x38] sm:$0xff]
        %v836 = vld [vmem:[%s827 + $0x40] sm:$0xff]
        %v837 = vld [vmem:[%s827 + $0x48] sm:$0xff]
        %v838 = vld [vmem:[%s827 + $0x50] sm:$0xff]
        %v839 = vld [vmem:[%s827 + $0x58] sm:$0xff]
        %v840 = vld [vmem:[%s827 + $0x60] sm:$0xff]
        %v841 = vld [vmem:[%s827 + $0x68] sm:$0xff]
        %v842 = vld [vmem:[%s827 + $0x70] sm:$0xff]
        %v843 = vld [vmem:[%s827 + $0x78] sm:$0xff]
        %v844 = vadd.f32 %v743, %v828
        %v845 = vadd.f32 %v744, %v829
        %v846 = vadd.f32 %v745, %v830
        %v847 = vadd.f32 %v746, %v831
        %v848 = vadd.f32 %v747, %v832
        %v849 = vadd.f32 %v748, %v833
        %v850 = vadd.f32 %v749, %v834
        %v851 = vadd.f32 %v750, %v835
        %v852 = vadd.f32 %v751, %v836
        %v853 = vadd.f32 %v752, %v837
        %v854 = vadd.f32 %v753, %v838
        %v855 = vadd.f32 %v754, %v839
        %v856 = vadd.f32 %v755, %v840
        %v857 = vadd.f32 %v756, %v841
        %v858 = vadd.f32 %v757, %v842
        %v859 = vadd.f32 %v758, %v843
        %v860 = vmul.f32 %v828, %v828
        %v861 = vmul.f32 %v829, %v829
        %v862 = vmul.f32 %v830, %v830
        %v863 = vmul.f32 %v831, %v831
        %v864 = vmul.f32 %v832, %v832
        %v865 = vmul.f32 %v833, %v833
        %v866 = vmul.f32 %v834, %v834
        %v867 = vmul.f32 %v835, %v835
        %v868 = vmul.f32 %v836, %v836
        %v869 = vmul.f32 %v837, %v837
        %v870 = vmul.f32 %v838, %v838
        %v871 = vmul.f32 %v839, %v839
        %v872 = vmul.f32 %v840, %v840
        %v873 = vmul.f32 %v841, %v841
        %v874 = vmul.f32 %v842, %v842
        %v875 = vmul.f32 %v843, %v843
        %v876 = vadd.f32 %v775, %v860
        %v877 = vadd.f32 %v776, %v861
        %v878 = vadd.f32 %v777, %v862
        %v879 = vadd.f32 %v778, %v863
        %v880 = vadd.f32 %v779, %v864
        %v881 = vadd.f32 %v780, %v865
        %v882 = vadd.f32 %v781, %v866
        %v883 = vadd.f32 %v782, %v867
        %v884 = vadd.f32 %v783, %v868
        %v885 = vadd.f32 %v784, %v869
        %v886 = vadd.f32 %v785, %v870
        %v887 = vadd.f32 %v786, %v871
        %v888 = vadd.f32 %v787, %v872
        %v889 = vadd.f32 %v788, %v873
        %v890 = vadd.f32 %v789, %v874
        %v891 = vadd.f32 %v790, %v875
        %v892 = vlaneseq
        %v893 = vshrl.u32 %v892, 7
        %v894 = vsub.s32 2, %v893
        %v895 = vrot.slane %v601, %v894
        %v896 = vmul.f32 %v828, %v895
        %v897 = vmul.f32 %v829, %v895
        %v898 = vmul.f32 %v830, %v895
        %v899 = vmul.f32 %v831, %v895
        %v900 = vmul.f32 %v832, %v895
        %v901 = vmul.f32 %v833, %v895
        %v902 = vmul.f32 %v834, %v895
        %v903 = vmul.f32 %v835, %v895
        %v904 = vmul.f32 %v836, %v895
        %v905 = vmul.f32 %v837, %v895
        %v906 = vmul.f32 %v838, %v895
        %v907 = vmul.f32 %v839, %v895
        %v908 = vmul.f32 %v840, %v895
        %v909 = vmul.f32 %v841, %v895
        %v910 = vmul.f32 %v842, %v895
        %v911 = vmul.f32 %v843, %v895
        %v912 = vadd.f32 %v811, %v896
        %v913 = vadd.f32 %v812, %v897
        %v914 = vadd.f32 %v813, %v898
        %v915 = vadd.f32 %v814, %v899
        %v916 = vadd.f32 %v815, %v900
        %v917 = vadd.f32 %v816, %v901
        %v918 = vadd.f32 %v817, %v902
        %v919 = vadd.f32 %v818, %v903
        %v920 = vadd.f32 %v819, %v904
        %v921 = vadd.f32 %v820, %v905
        %v922 = vadd.f32 %v821, %v906
        %v923 = vadd.f32 %v822, %v907
        %v924 = vadd.f32 %v823, %v908
        %v925 = vadd.f32 %v824, %v909
        %v926 = vadd.f32 %v825, %v910
        %v927 = vadd.f32 %v826, %v911
        %vm928 = vcmask 130048
        %v929 = vsel %vm928, %v912, 0.0
        %930 = vadd.xlane.f32.xlu0 %v929
        %v931 = vpop.xlane.xlu0 %930
        %v932 = vsel %vm928, %v913, 0.0
        %933 = vadd.xlane.f32.xlu0 %v932
        %v934 = vpop.xlane.xlu0 %933
        %v935 = vsel %vm928, %v914, 0.0
        %936 = vadd.xlane.f32.xlu0 %v935
        %v937 = vpop.xlane.xlu0 %936
        %v938 = vsel %vm928, %v915, 0.0
        %939 = vadd.xlane.f32.xlu0 %v938
        %v940 = vpop.xlane.xlu0 %939
        %v941 = vsel %vm928, %v916, 0.0
        %942 = vadd.xlane.f32.xlu0 %v941
        %v943 = vpop.xlane.xlu0 %942
        %v944 = vsel %vm928, %v917, 0.0
        %945 = vadd.xlane.f32.xlu0 %v944
        %v946 = vpop.xlane.xlu0 %945
        %v947 = vsel %vm928, %v918, 0.0
        %948 = vadd.xlane.f32.xlu0 %v947
        %v949 = vpop.xlane.xlu0 %948
        %v950 = vsel %vm928, %v919, 0.0
        %951 = vadd.xlane.f32.xlu0 %v950
        %v952 = vpop.xlane.xlu0 %951
        %v953 = vsel %vm928, %v920, 0.0
        %954 = vadd.xlane.f32.xlu0 %v953
        %v955 = vpop.xlane.xlu0 %954
        %v956 = vsel %vm928, %v921, 0.0
        %957 = vadd.xlane.f32.xlu0 %v956
        %v958 = vpop.xlane.xlu0 %957
        %v959 = vsel %vm928, %v922, 0.0
        %960 = vadd.xlane.f32.xlu0 %v959
        %v961 = vpop.xlane.xlu0 %960
        %v962 = vsel %vm928, %v923, 0.0
        %963 = vadd.xlane.f32.xlu0 %v962
        %v964 = vpop.xlane.xlu0 %963
        %v965 = vsel %vm928, %v924, 0.0
        %966 = vadd.xlane.f32.xlu0 %v965
        %v967 = vpop.xlane.xlu0 %966
        %v968 = vsel %vm928, %v925, 0.0
        %969 = vadd.xlane.f32.xlu0 %v968
        %v970 = vpop.xlane.xlu0 %969
        %v971 = vsel %vm928, %v926, 0.0
        %972 = vadd.xlane.f32.xlu0 %v971
        %v973 = vpop.xlane.xlu0 %972
        %v974 = vsel %vm928, %v927, 0.0
        %975 = vadd.xlane.f32.xlu0 %v974
        %v976 = vpop.xlane.xlu0 %975
        %v977 = vadd.f32 %v628, %v931
        %v978 = vadd.f32 %v631, %v934
        %v979 = vadd.f32 %v634, %v937
        %v980 = vadd.f32 %v637, %v940
        %v981 = vadd.f32 %v640, %v943
        %v982 = vadd.f32 %v643, %v946
        %v983 = vadd.f32 %v646, %v949
        %v984 = vadd.f32 %v649, %v952
        %v985 = vadd.f32 %v652, %v955
        %v986 = vadd.f32 %v655, %v958
        %v987 = vadd.f32 %v658, %v961
        %v988 = vadd.f32 %v661, %v964
        %v989 = vadd.f32 %v664, %v967
        %v990 = vadd.f32 %v667, %v970
        %v991 = vadd.f32 %v670, %v973
        %v992 = vadd.f32 %v673, %v976
        %v993 = vld [vmem:[#allocation2] sm:$0x1]
        %v995 = vlaneseq
        %v996 = vshrl.u32 %v995, 7
        %v997 = vsub.s32 0, %v996
        %v998 = vrot.slane %v993, %v997
        %v1000 = vadd.f32 %v977, %v998
        %v1001 = vadd.f32 %v978, %v998
        %v1002 = vadd.f32 %v979, %v998
        %v1003 = vadd.f32 %v980, %v998
        %v1004 = vadd.f32 %v981, %v998
        %v1005 = vadd.f32 %v982, %v998
        %v1006 = vadd.f32 %v983, %v998
        %v1007 = vadd.f32 %v984, %v998
        %v1008 = vadd.f32 %v985, %v998
        %v1009 = vadd.f32 %v986, %v998
        %v1010 = vadd.f32 %v987, %v998
        %v1011 = vadd.f32 %v988, %v998
        %v1012 = vadd.f32 %v989, %v998
        %v1013 = vadd.f32 %v990, %v998
        %v1014 = vadd.f32 %v991, %v998
        %v1015 = vadd.f32 %v992, %v998
        %v1016 = vmul.f32 %v844, %v844
        %v1017 = vmul.f32 %v845, %v845
        %v1018 = vmul.f32 %v846, %v846
        %v1019 = vmul.f32 %v847, %v847
        %v1020 = vmul.f32 %v848, %v848
        %v1021 = vmul.f32 %v849, %v849
        %v1022 = vmul.f32 %v850, %v850
        %v1023 = vmul.f32 %v851, %v851
        %v1024 = vmul.f32 %v852, %v852
        %v1025 = vmul.f32 %v853, %v853
        %v1026 = vmul.f32 %v854, %v854
        %v1027 = vmul.f32 %v855, %v855
        %v1028 = vmul.f32 %v856, %v856
        %v1029 = vmul.f32 %v857, %v857
        %v1030 = vmul.f32 %v858, %v858
        %v1031 = vmul.f32 %v859, %v859
        %v1032 = vsub.f32 %v1016, %v876
        %v1033 = vsub.f32 %v1017, %v877
        %v1034 = vsub.f32 %v1018, %v878
        %v1035 = vsub.f32 %v1019, %v879
        %v1036 = vsub.f32 %v1020, %v880
        %v1037 = vsub.f32 %v1021, %v881
        %v1038 = vsub.f32 %v1022, %v882
        %v1039 = vsub.f32 %v1023, %v883
        %v1040 = vsub.f32 %v1024, %v884
        %v1041 = vsub.f32 %v1025, %v885
        %v1042 = vsub.f32 %v1026, %v886
        %v1043 = vsub.f32 %v1027, %v887
        %v1044 = vsub.f32 %v1028, %v888
        %v1045 = vsub.f32 %v1029, %v889
        %v1046 = vsub.f32 %v1030, %v890
        %v1047 = vsub.f32 %v1031, %v891
        %v1048 = vmul.f32 %v1032, 0.5
        %v1049 = vmul.f32 %v1033, 0.5
        %v1050 = vmul.f32 %v1034, 0.5
        %v1051 = vmul.f32 %v1035, 0.5
        %v1052 = vmul.f32 %v1036, 0.5
        %v1053 = vmul.f32 %v1037, 0.5
        %v1054 = vmul.f32 %v1038, 0.5
        %v1055 = vmul.f32 %v1039, 0.5
        %v1056 = vmul.f32 %v1040, 0.5
        %v1057 = vmul.f32 %v1041, 0.5
        %v1058 = vmul.f32 %v1042, 0.5
        %v1059 = vmul.f32 %v1043, 0.5
        %v1060 = vmul.f32 %v1044, 0.5
        %v1061 = vmul.f32 %v1045, 0.5
        %v1062 = vmul.f32 %v1046, 0.5
        %v1063 = vmul.f32 %v1047, 0.5
        %v1064 = vld [vmem:[%s5] sm:$0xff]
        %v1065 = vld [vmem:[%s5 + $0x8] sm:$0xff]
        %v1066 = vld [vmem:[%s6] sm:$0x1]
        %v1068 = vlaneseq
        %v1069 = vshrl.u32 %v1068, 7
        %v1070 = vsub.s32 0, %v1069
        %v1071 = vrot.slane %v1066, %v1070
        %v1074 = vsel %vm928, %v1048, 0
        %v1077 = vsel %vm928, %v1049, 0
        %v1080 = vsel %vm928, %v1050, 0
        %v1083 = vsel %vm928, %v1051, 0
        %v1086 = vsel %vm928, %v1052, 0
        %v1089 = vsel %vm928, %v1053, 0
        %v1092 = vsel %vm928, %v1054, 0
        %v1095 = vsel %vm928, %v1055, 0
        %v1098 = vsel %vm928, %v1056, 0
        %v1101 = vsel %vm928, %v1057, 0
        %v1104 = vsel %vm928, %v1058, 0
        %v1107 = vsel %vm928, %v1059, 0
        %v1110 = vsel %vm928, %v1060, 0
        %v1113 = vsel %vm928, %v1061, 0
        %v1116 = vsel %vm928, %v1062, 0
        %v1119 = vsel %vm928, %v1063, 0
        %1121 = vmatprep.subr.mxu0 0.0
        %1122 = vmatpush1.msra.mxu0 0.0
        %1123 = vmatprep.subr.mxu0 0.0
        %1124 = vmatpush1.msra.mxu0 0.0
        %1125 = vmatprep.subr.mxu0 0.0
        %1126 = vmatpush1.msra.mxu0 0.0
        %1127 = vmatprep.subr.mxu0 0.0
        %1128 = vmatpush1.msra.mxu0 0.0
        %1129 = vmatprep.subr.mxu0 0.0
        %1130 = vmatpush1.msra.mxu0 0.0
        %1131 = vmatprep.subr.mxu0 0.0
        %1132 = vmatpush1.msra.mxu0 0.0
        %1133 = vmatprep.subr.mxu0 0.0
        %1134 = vmatpush1.msra.mxu0 0.0
        %1135 = vmatprep.subr.mxu0 0.0
        %1136 = vmatpush1.msra.mxu0 0.0
        %1137 = vmatprep.subr.mxu0 0.0
        %1138 = vmatpush1.msra.mxu0 0.0
        %1139 = vmatprep.subr.mxu0 0.0
        %1140 = vmatpush1.msra.mxu0 0.0
        %1141 = vmatprep.subr.mxu0 0.0
        %1142 = vmatpush1.msra.mxu0 0.0
        %1143 = vmatprep.subr.mxu0 0.0
        %1144 = vmatpush1.msra.mxu0 0.0
        %1145 = vmatprep.subr.mxu0 0.0
        %1146 = vmatpush1.msra.mxu0 0.0
        %1147 = vmatprep.subr.mxu0 0.0
        %1148 = vmatpush1.msra.mxu0 0.0
        %1149 = vmatprep.subr.mxu0 0.0
        %1150 = vmatpush1.msra.mxu0 %v1065
        %1151 = vmatprep.subr.mxu0 0.0
        %1152 = vmatpush1.msra.mxu0 %v1064
        %1153 = vmatprep.subr.mxu0 0.0
        %1154 = vmatpush2.msra.mxu0 0.0
        %1155 = vmatprep.subr.mxu0 0.0
        %1156 = vmatpush2.msra.mxu0 0.0
        %1157 = vmatprep.subr.mxu0 0.0
        %1158 = vmatpush2.msra.mxu0 0.0
        %1159 = vmatprep.subr.mxu0 0.0
        %1160 = vmatpush2.msra.mxu0 0.0
        %1161 = vmatprep.subr.mxu0 0.0
        %1162 = vmatpush2.msra.mxu0 0.0
        %1163 = vmatprep.subr.mxu0 0.0
        %1164 = vmatpush2.msra.mxu0 0.0
        %1165 = vmatprep.subr.mxu0 0.0
        %1166 = vmatpush2.msra.mxu0 0.0
        %1167 = vmatprep.subr.mxu0 0.0
        %1168 = vmatpush2.msra.mxu0 0.0
        %1169 = vmatprep.subr.mxu0 0.0
        %1170 = vmatpush2.msra.mxu0 0.0
        %1171 = vmatprep.subr.mxu0 0.0
        %1172 = vmatpush2.msra.mxu0 0.0
        %1173 = vmatprep.subr.mxu0 0.0
        %1174 = vmatpush2.msra.mxu0 0.0
        %1175 = vmatprep.subr.mxu0 0.0
        %1176 = vmatpush2.msra.mxu0 0.0
        %1177 = vmatprep.subr.mxu0 0.0
        %1178 = vmatpush2.msra.mxu0 0.0
        %1179 = vmatprep.subr.mxu0 0.0
        %1180 = vmatpush2.msra.mxu0 0.0
        %1181 = vmatprep.subr.mxu0 0.0
        %1182 = vmatpush2.msra.mxu0 0.0
        %1183 = vmatprep.subr.mxu0 0.0
        %1184 = vmatpush2.msra.mxu0 0.0
        %1185 = vmatprep.mubr.f32.mxu0 0.0
        %1186 = vmatmul.mubr.f32.gmra.mxu0 %v1074
        %v1187 = vpop.f32.mrf.mxu0
        %v1188 = vadd.f32 %v1071, %v1187
        %v1189 = vpop.f32.mrf.mxu0
        %1190 = vmatprep.mubr.f32.mxu0 0.0
        %1191 = vmatmul.mubr.f32.gmra.mxu0 %v1077
        %v1192 = vpop.f32.mrf.mxu0
        %v1193 = vadd.f32 %v1071, %v1192
        %v1194 = vpop.f32.mrf.mxu0
        %1195 = vmatprep.mubr.f32.mxu0 0.0
        %1196 = vmatmul.mubr.f32.gmra.mxu0 %v1080
        %v1197 = vpop.f32.mrf.mxu0
        %v1198 = vadd.f32 %v1071, %v1197
        %v1199 = vpop.f32.mrf.mxu0
        %1200 = vmatprep.mubr.f32.mxu0 0.0
        %1201 = vmatmul.mubr.f32.gmra.mxu0 %v1083
        %v1202 = vpop.f32.mrf.mxu0
        %v1203 = vadd.f32 %v1071, %v1202
        %v1204 = vpop.f32.mrf.mxu0
        %1205 = vmatprep.mubr.f32.mxu0 0.0
        %1206 = vmatmul.mubr.f32.gmra.mxu0 %v1086
        %v1207 = vpop.f32.mrf.mxu0
        %v1208 = vadd.f32 %v1071, %v1207
        %v1209 = vpop.f32.mrf.mxu0
        %1210 = vmatprep.mubr.f32.mxu0 0.0
        %1211 = vmatmul.mubr.f32.gmra.mxu0 %v1089
        %v1212 = vpop.f32.mrf.mxu0
        %v1213 = vadd.f32 %v1071, %v1212
        %v1214 = vpop.f32.mrf.mxu0
        %1215 = vmatprep.mubr.f32.mxu0 0.0
        %1216 = vmatmul.mubr.f32.gmra.mxu0 %v1092
        %v1217 = vpop.f32.mrf.mxu0
        %v1218 = vadd.f32 %v1071, %v1217
        %v1219 = vpop.f32.mrf.mxu0
        %1220 = vmatprep.mubr.f32.mxu0 0.0
        %1221 = vmatmul.mubr.f32.gmra.mxu0 %v1095
        %v1222 = vpop.f32.mrf.mxu0
        %v1223 = vadd.f32 %v1071, %v1222
        %v1224 = vpop.f32.mrf.mxu0
        %1225 = vmatprep.mubr.f32.mxu0 0.0
        %1226 = vmatmul.mubr.f32.gmra.mxu0 %v1098
        %v1227 = vpop.f32.mrf.mxu0
        %v1228 = vadd.f32 %v1071, %v1227
        %v1229 = vpop.f32.mrf.mxu0
        %1230 = vmatprep.mubr.f32.mxu0 0.0
        %1231 = vmatmul.mubr.f32.gmra.mxu0 %v1101
        %v1232 = vpop.f32.mrf.mxu0
        %v1233 = vadd.f32 %v1071, %v1232
        %v1234 = vpop.f32.mrf.mxu0
        %1235 = vmatprep.mubr.f32.mxu0 0.0
        %1236 = vmatmul.mubr.f32.gmra.mxu0 %v1104
        %v1237 = vpop.f32.mrf.mxu0
        %v1238 = vadd.f32 %v1071, %v1237
        %v1239 = vpop.f32.mrf.mxu0
        %1240 = vmatprep.mubr.f32.mxu0 0.0
        %1241 = vmatmul.mubr.f32.gmra.mxu0 %v1107
        %v1242 = vpop.f32.mrf.mxu0
        %v1243 = vadd.f32 %v1071, %v1242
        %v1244 = vpop.f32.mrf.mxu0
        %1245 = vmatprep.mubr.f32.mxu0 0.0
        %1246 = vmatmul.mubr.f32.gmra.mxu0 %v1110
        %v1247 = vpop.f32.mrf.mxu0
        %v1248 = vadd.f32 %v1071, %v1247
        %v1249 = vpop.f32.mrf.mxu0
        %1250 = vmatprep.mubr.f32.mxu0 0.0
        %1251 = vmatmul.mubr.f32.gmra.mxu0 %v1113
        %v1252 = vpop.f32.mrf.mxu0
        %v1253 = vadd.f32 %v1071, %v1252
        %v1254 = vpop.f32.mrf.mxu0
        %1255 = vmatprep.mubr.f32.mxu0 0.0
        %1256 = vmatmul.mubr.f32.gmra.mxu0 %v1116
        %v1257 = vpop.f32.mrf.mxu0
        %v1258 = vadd.f32 %v1071, %v1257
        %v1259 = vpop.f32.mrf.mxu0
        %1260 = vmatprep.mubr.f32.mxu0 0.0
        %1261 = vmatmul.mubr.f32.gmra.mxu0 %v1119
        %v1262 = vpop.f32.mrf.mxu0
        %v1263 = vadd.f32 %v1071, %v1262
        %v1264 = vpop.f32.mrf.mxu0
        %1265 = vdwg.mxu0
        %v1266 = vmax.f32 %v1188, 0.0
        %v1267 = vmax.f32 %v1193, 0.0
        %v1268 = vmax.f32 %v1198, 0.0
        %v1269 = vmax.f32 %v1203, 0.0
        %v1270 = vmax.f32 %v1208, 0.0
        %v1271 = vmax.f32 %v1213, 0.0
        %v1272 = vmax.f32 %v1218, 0.0
        %v1273 = vmax.f32 %v1223, 0.0
        %v1274 = vmax.f32 %v1228, 0.0
        %v1275 = vmax.f32 %v1233, 0.0
        %v1276 = vmax.f32 %v1238, 0.0
        %v1277 = vmax.f32 %v1243, 0.0
        %v1278 = vmax.f32 %v1248, 0.0
        %v1279 = vmax.f32 %v1253, 0.0
        %v1280 = vmax.f32 %v1258, 0.0
        %v1281 = vmax.f32 %v1263, 0.0
        %v1282 = vld [vmem:[%s7] sm:$0x1]
        %v1284 = vlaneseq
        %v1285 = vshrl.u32 %v1284, 7
        %v1286 = vsub.s32 0, %v1285
        %v1287 = vrot.slane %v1282, %v1286
        %v1289 = vmul.f32 %v1266, %v1287
        %v1290 = vmul.f32 %v1267, %v1287
        %v1291 = vmul.f32 %v1268, %v1287
        %v1292 = vmul.f32 %v1269, %v1287
        %v1293 = vmul.f32 %v1270, %v1287
        %v1294 = vmul.f32 %v1271, %v1287
        %v1295 = vmul.f32 %v1272, %v1287
        %v1296 = vmul.f32 %v1273, %v1287
        %v1297 = vmul.f32 %v1274, %v1287
        %v1298 = vmul.f32 %v1275, %v1287
        %v1299 = vmul.f32 %v1276, %v1287
        %v1300 = vmul.f32 %v1277, %v1287
        %v1301 = vmul.f32 %v1278, %v1287
        %v1302 = vmul.f32 %v1279, %v1287
        %v1303 = vmul.f32 %v1280, %v1287
        %v1304 = vmul.f32 %v1281, %v1287
        %vm1305 = vcmask 261120
        %v1306 = vsel %vm1305, %v1289, 0.0
        %1307 = vadd.xlane.f32.xlu0 %v1306
        %v1308 = vpop.xlane.xlu0 %1307
        %v1309 = vsel %vm1305, %v1290, 0.0
        %1310 = vadd.xlane.f32.xlu0 %v1309
        %v1311 = vpop.xlane.xlu0 %1310
        %v1312 = vsel %vm1305, %v1291, 0.0
        %1313 = vadd.xlane.f32.xlu0 %v1312
        %v1314 = vpop.xlane.xlu0 %1313
        %v1315 = vsel %vm1305, %v1292, 0.0
        %1316 = vadd.xlane.f32.xlu0 %v1315
        %v1317 = vpop.xlane.xlu0 %1316
        %v1318 = vsel %vm1305, %v1293, 0.0
        %1319 = vadd.xlane.f32.xlu0 %v1318
        %v1320 = vpop.xlane.xlu0 %1319
        %v1321 = vsel %vm1305, %v1294, 0.0
        %1322 = vadd.xlane.f32.xlu0 %v1321
        %v1323 = vpop.xlane.xlu0 %1322
        %v1324 = vsel %vm1305, %v1295, 0.0
        %1325 = vadd.xlane.f32.xlu0 %v1324
        %v1326 = vpop.xlane.xlu0 %1325
        %v1327 = vsel %vm1305, %v1296, 0.0
        %1328 = vadd.xlane.f32.xlu0 %v1327
        %v1329 = vpop.xlane.xlu0 %1328
        %v1330 = vsel %vm1305, %v1297, 0.0
        %1331 = vadd.xlane.f32.xlu0 %v1330
        %v1332 = vpop.xlane.xlu0 %1331
        %v1333 = vsel %vm1305, %v1298, 0.0
        %1334 = vadd.xlane.f32.xlu0 %v1333
        %v1335 = vpop.xlane.xlu0 %1334
        %v1336 = vsel %vm1305, %v1299, 0.0
        %1337 = vadd.xlane.f32.xlu0 %v1336
        %v1338 = vpop.xlane.xlu0 %1337
        %v1339 = vsel %vm1305, %v1300, 0.0
        %1340 = vadd.xlane.f32.xlu0 %v1339
        %v1341 = vpop.xlane.xlu0 %1340
        %v1342 = vsel %vm1305, %v1301, 0.0
        %1343 = vadd.xlane.f32.xlu0 %v1342
        %v1344 = vpop.xlane.xlu0 %1343
        %v1345 = vsel %vm1305, %v1302, 0.0
        %1346 = vadd.xlane.f32.xlu0 %v1345
        %v1347 = vpop.xlane.xlu0 %1346
        %v1348 = vsel %vm1305, %v1303, 0.0
        %1349 = vadd.xlane.f32.xlu0 %v1348
        %v1350 = vpop.xlane.xlu0 %1349
        %v1351 = vsel %vm1305, %v1304, 0.0
        %1352 = vadd.xlane.f32.xlu0 %v1351
        %v1353 = vpop.xlane.xlu0 %1352
        %v1354 = vld [vmem:[#allocation3] sm:$0x1]
        %v1356 = vlaneseq
        %v1357 = vshrl.u32 %v1356, 7
        %v1358 = vsub.s32 0, %v1357
        %v1359 = vrot.slane %v1354, %v1358
        %v1361 = vadd.f32 %v1308, %v1359
        %v1362 = vadd.f32 %v1311, %v1359
        %v1363 = vadd.f32 %v1314, %v1359
        %v1364 = vadd.f32 %v1317, %v1359
        %v1365 = vadd.f32 %v1320, %v1359
        %v1366 = vadd.f32 %v1323, %v1359
        %v1367 = vadd.f32 %v1326, %v1359
        %v1368 = vadd.f32 %v1329, %v1359
        %v1369 = vadd.f32 %v1332, %v1359
        %v1370 = vadd.f32 %v1335, %v1359
        %v1371 = vadd.f32 %v1338, %v1359
        %v1372 = vadd.f32 %v1341, %v1359
        %v1373 = vadd.f32 %v1344, %v1359
        %v1374 = vadd.f32 %v1347, %v1359
        %v1375 = vadd.f32 %v1350, %v1359
        %v1376 = vadd.f32 %v1353, %v1359
        %v1377 = vmax.f32 %v1361, 0.0
        %v1378 = vmax.f32 %v1362, 0.0
        %v1379 = vmax.f32 %v1363, 0.0
        %v1380 = vmax.f32 %v1364, 0.0
        %v1381 = vmax.f32 %v1365, 0.0
        %v1382 = vmax.f32 %v1366, 0.0
        %v1383 = vmax.f32 %v1367, 0.0
        %v1384 = vmax.f32 %v1368, 0.0
        %v1385 = vmax.f32 %v1369, 0.0
        %v1386 = vmax.f32 %v1370, 0.0
        %v1387 = vmax.f32 %v1371, 0.0
        %v1388 = vmax.f32 %v1372, 0.0
        %v1389 = vmax.f32 %v1373, 0.0
        %v1390 = vmax.f32 %v1374, 0.0
        %v1391 = vmax.f32 %v1375, 0.0
        %v1392 = vmax.f32 %v1376, 0.0
        %v1393 = vadd.f32 %v1000, %v1377
        %v1394 = vadd.f32 %v1001, %v1378
        %v1395 = vadd.f32 %v1002, %v1379
        %v1396 = vadd.f32 %v1003, %v1380
        %v1397 = vadd.f32 %v1004, %v1381
        %v1398 = vadd.f32 %v1005, %v1382
        %v1399 = vadd.f32 %v1006, %v1383
        %v1400 = vadd.f32 %v1007, %v1384
        %v1401 = vadd.f32 %v1008, %v1385
        %v1402 = vadd.f32 %v1009, %v1386
        %v1403 = vadd.f32 %v1010, %v1387
        %v1404 = vadd.f32 %v1011, %v1388
        %v1405 = vadd.f32 %v1012, %v1389
        %v1406 = vadd.f32 %v1013, %v1390
        %v1407 = vadd.f32 %v1014, %v1391
        %v1408 = vadd.f32 %v1015, %v1392
        %vm1409 = vcmask 7168
        %1410 = vst.msk [vmem:[%s583] sm:$0xff] %vm1409, %v1393
        %1411 = vst.msk [vmem:[%s583 + $0x8] sm:$0xff] %vm1409, %v1394
        %1412 = vst.msk [vmem:[%s583 + $0x10] sm:$0xff] %vm1409, %v1395
        %1413 = vst.msk [vmem:[%s583 + $0x18] sm:$0xff] %vm1409, %v1396
        %1414 = vst.msk [vmem:[%s583 + $0x20] sm:$0xff] %vm1409, %v1397
        %1415 = vst.msk [vmem:[%s583 + $0x28] sm:$0xff] %vm1409, %v1398
        %1416 = vst.msk [vmem:[%s583 + $0x30] sm:$0xff] %vm1409, %v1399
        %1417 = vst.msk [vmem:[%s583 + $0x38] sm:$0xff] %vm1409, %v1400
        %1418 = vst.msk [vmem:[%s583 + $0x40] sm:$0xff] %vm1409, %v1401
        %1419 = vst.msk [vmem:[%s583 + $0x48] sm:$0xff] %vm1409, %v1402
        %1420 = vst.msk [vmem:[%s583 + $0x50] sm:$0xff] %vm1409, %v1403
        %1421 = vst.msk [vmem:[%s583 + $0x58] sm:$0xff] %vm1409, %v1404
        %1422 = vst.msk [vmem:[%s583 + $0x60] sm:$0xff] %vm1409, %v1405
        %1423 = vst.msk [vmem:[%s583 + $0x68] sm:$0xff] %vm1409, %v1406
        %1424 = vst.msk [vmem:[%s583 + $0x70] sm:$0xff] %vm1409, %v1407
        %1425 = vst.msk [vmem:[%s583 + $0x78] sm:$0xff] %vm1409, %v1408
        %s1426 = smul.u32 16, %s24
        %p1427 = scmp.lt.s32.totalorder %s1426, 31
        %s1428 = scalar_select %p1427, %s1426, 31
        %s1429 = smul.addr %s1428, 8
        %s1430 = scalar_lea.vmem %s9, %s1429
        // Predicated region
        $region95: #{nfm_forward.1} parent=89 // pred_check
          %p1431 = pneg %p241
        $region96: #{nfm_forward.1} parent=89 // pred_check_branch
          %1433 = sbr.rel (%p1431) target = $region98
        $region97: #{nfm_forward.1} parent=89 // pred_region
          %s1434 = smul.u32 16, %s24
        $region98: #{nfm_forward.1} parent=89 // pred_fallthru
          _
      $region90: #{nfm_forward.1} parent=5 // pred_fallthru
        _
      %p1435 = scmp.le.s32.totalorder 2, %s19
      // Predicated region
      $region99: #{nfm_forward.1} parent=5 // pred_check
        %p1436 = pneg %p1435
      $region100: #{nfm_forward.1} parent=5 // pred_check_branch
        %1438 = sbr.rel (%p1436) target = $region102
      $region101: #{nfm_forward.1} parent=5 // pred_region
        %s1439 = ssub.s32 %s19, 2
        // Predicated region
        $region103: #{nfm_forward.1} parent=101 // pred_check
          %p1440 = pneg %p247
        $region104: #{nfm_forward.1} parent=101 // pred_check_branch
          %1442 = sbr.rel (%p1440) target = $region106
        $region105: #{nfm_forward.1} parent=101 // pred_region
          %s1443 = smul.u32 16, %s25
          %p1444 = scmp.lt.s32.totalorder %s1443, 31
          %s1445 = scalar_select %p1444, %s1443, 31
          %s1446 = smul.addr %s1445, 8
          %s1447 = scalar_lea.vmem %s9, %s1446
        $region106: #{nfm_forward.1} parent=101 // pred_fallthru
          _
      $region102: #{nfm_forward.1} parent=5 // pred_fallthru
        _
    $region6: #{nfm_forward.1} parent=1 // loop_footer
      %s23 = sadd.s32 1, %s19
    $region7: #{nfm_forward.1} parent=1 // loop_footer_branch
      %18 = sbr.rel target = $region3
    $region8: #{nfm_forward.1} parent=1 // loop_exit
      _

</llo_original>
